<compile_context>
chip_gen: v7x
topology: tpu7x:2x2x1
jax: 0.10.0
libtpu: 0.0.40
codegen_flags: <defaults>
</compile_context>

<pallas_src>
import jax
import jax.numpy as jnp
import numpy as np
from jax.experimental import pallas as pl
from jax.experimental.pallas import tpu as pltpu

HIDDEN_DIM = 2048          # DCC.hidden_dim (ResNet-50 feature width)
BOTTLENECK_DIM = 256       # CLS bottle_neck_dim
BN_EPS = 1e-5              # nn.BatchNorm1d default eps
LANE = 128


def _dcc_head_kernel(x_ref, w1_ref, b1_ref, w2_ref, b2_ref,
                     feat_ref, bott_ref, logits_ref, prob_ref):
    # x_ref: (TB, HW, C) bf16 trunk feature map, channels on lanes.

    # AdaptiveAvgPool2d((1,1)) + .squeeze(): mean over spatial positions.
    # Sublane (XLU) reduce, accumulated in f32 — different VLIW slot from the
    # MXU / load slots that dominate this DMA-bound kernel.
    feat = jnp.mean(x_ref[...].astype(jnp.float32), axis=1)           # (TB, C) f32
    feat_ref[...] = feat

    # bottleneck Linear(2048 -> 256) with eval-mode BatchNorm1d pre-folded
    # into (w1, b1).  bf16 MXU matmul, f32 accumulation.
    bn = jnp.dot(feat.astype(jnp.bfloat16), w1_ref[...],
                 preferred_element_type=jnp.float32) + b1_ref[...]    # (TB, 256) f32
    bott_ref[...] = bn

    # fc Linear(256 -> Kp): classes padded to a lane-dense multiple of 128;
    # padded bias = -1e30 so padded lanes never affect the softmax.
    logits = jnp.dot(bn.astype(jnp.bfloat16), w2_ref[...],
                     preferred_element_type=jnp.float32) + b2_ref[...]
    logits_ref[...] = logits

    # numerically-stable softmax over classes (padded lanes -> exactly 0).
    m = jnp.max(logits, axis=-1, keepdims=True)
    e = jnp.exp(logits - m)
    prob_ref[...] = e / jnp.sum(e, axis=-1, keepdims=True)


def _fold_and_pad_params(p):
    """One-time offline prep: fold eval-mode BN into the bottleneck Linear and
    pad the class dimension to a lane-dense multiple of 128."""
    scale = p["gamma"] * jax.lax.rsqrt(p["running_var"] + BN_EPS)       # (256,)
    w1 = (p["w1"] * scale[None, :]).astype(jnp.bfloat16)                # (2048, 256)
    b1 = ((p["b1"] - p["running_mean"]) * scale + p["beta"]).astype(jnp.float32)

    K = p["w2"].shape[1]
    Kp = max(LANE, ((K + LANE - 1) // LANE) * LANE)
    w2 = jnp.zeros((BOTTLENECK_DIM, Kp), jnp.bfloat16).at[:, :K].set(
        p["w2"].astype(jnp.bfloat16))
    b2 = jnp.full((Kp,), -1e30, jnp.float32).at[:K].set(p["b2"])
    return w1, b1.reshape(1, -1), w2, b2.reshape(1, -1), K, Kp


def _pick_batch_tile(B, target=8):
    # Output blocks are 2-D (TB, lanes): TB must be a multiple of 8 unless it
    # spans the whole batch.
    for t in range(min(B, target), 0, -1):
        if B % t == 0 and t % 8 == 0:
            return t
    return B


def dcc_forward(x, params, *, batch_tile=8):
    """x: (B, Hf*Wf, 2048) channels-last trunk feature map (bf16 recommended)."""
    B, HW, C = x.shape
    assert C == HIDDEN_DIM
    w1, b1, w2, b2, K, Kp = _fold_and_pad_params(params)

    TB = _pick_batch_tile(B, batch_tile)
    grid = (B // TB,)

    feat, bott, logits_p, prob_p = pl.pallas_call(
        _dcc_head_kernel,
        out_shape=(
            jax.ShapeDtypeStruct((B, C), jnp.float32),               # feat
            jax.ShapeDtypeStruct((B, BOTTLENECK_DIM), jnp.float32),  # post-BN bottleneck
            jax.ShapeDtypeStruct((B, Kp), jnp.float32),              # "prob" (fc logits)
            jax.ShapeDtypeStruct((B, Kp), jnp.float32),              # softmax(prob)
        ),
        grid=grid,
        in_specs=[
            pl.BlockSpec((TB, HW, C), lambda b: (b, 0, 0)),           # pipelined x tiles
            pl.BlockSpec((C, BOTTLENECK_DIM), lambda b: (0, 0)),      # weights stay
            pl.BlockSpec((1, BOTTLENECK_DIM), lambda b: (0, 0)),      # VMEM-resident
            pl.BlockSpec((BOTTLENECK_DIM, Kp), lambda b: (0, 0)),
            pl.BlockSpec((1, Kp), lambda b: (0, 0)),
        ],
        out_specs=(
            pl.BlockSpec((TB, C), lambda b: (b, 0)),
            pl.BlockSpec((TB, BOTTLENECK_DIM), lambda b: (b, 0)),
            pl.BlockSpec((TB, Kp), lambda b: (b, 0)),
            pl.BlockSpec((TB, Kp), lambda b: (b, 0)),
        ),
        compiler_params=pltpu.CompilerParams(
            dimension_semantics=("parallel",),        # v7x: shard batch over 2 TCs
            vmem_limit_bytes=32 * 1024 * 1024,        # fits v5e/v6e/v7x scoped VMEM
        ),
    )(x, w1, b1, w2, b2)

    # Drop the class padding (tiny XLA slice, lane-dense stores inside the kernel).
    return feat, bott, logits_p[:, :K], prob_p[:, :K]


def init_params(key, num_classes):
    ks = jax.random.split(key, 8)
    return dict(
        w1=0.02 * jax.random.normal(ks[0], (HIDDEN_DIM, BOTTLENECK_DIM), jnp.float32),
        b1=0.01 * jax.random.normal(ks[1], (BOTTLENECK_DIM,), jnp.float32),
        gamma=1.0 + 0.1 * jax.random.normal(ks[2], (BOTTLENECK_DIM,), jnp.float32),
        beta=0.1 * jax.random.normal(ks[3], (BOTTLENECK_DIM,), jnp.float32),
        running_mean=0.1 * jax.random.normal(ks[4], (BOTTLENECK_DIM,), jnp.float32),
        running_var=jnp.abs(jax.random.normal(ks[5], (BOTTLENECK_DIM,), jnp.float32)) + 0.5,
        w2=0.05 * jax.random.normal(ks[6], (BOTTLENECK_DIM, num_classes), jnp.float32),
        b2=0.01 * jax.random.normal(ks[7], (num_classes,), jnp.float32),
    )


def dcc_reference(x, p):
    """Pure-JAX reference of the same forward (same bf16/f32 dtype path)."""
    scale = p["gamma"] * jax.lax.rsqrt(p["running_var"] + BN_EPS)
    w1 = (p["w1"] * scale[None, :]).astype(jnp.bfloat16)
    b1 = (p["b1"] - p["running_mean"]) * scale + p["beta"]
    feat = jnp.mean(x.astype(jnp.float32), axis=1)
    bn = jnp.dot(feat.astype(jnp.bfloat16), w1,
                 preferred_element_type=jnp.float32) + b1
    logits = jnp.dot(bn.astype(jnp.bfloat16), p["w2"].astype(jnp.bfloat16),
                     preferred_element_type=jnp.float32) + p["b2"]
    prob = jax.nn.softmax(logits, axis=-1)
    return feat, bn, logits, prob


if __name__ == "__main__":
    key = jax.random.PRNGKey(0)
    k_x, k_p = jax.random.split(key)

    B, Hf, Wf = 2, 4, 4
    NUM_CLASSES = 8  # len(source_classes)

    # Stand-in for the ResNet-50 trunk output feature map, already channels-last
    # (B, Hf*Wf, 2048) and bf16 — the layout/dtype the JAX trunk should emit, so
    # no extra HBM transpose pass is required.
    x = jax.random.normal(
        k_x, (B, Hf * Wf, HIDDEN_DIM), jnp.float32).astype(jnp.bfloat16)
    params = init_params(k_p, NUM_CLASSES)

    outs = jax.block_until_ready(dcc_forward(x, params))
    ref = dcc_reference(x, params)

    for got, want in zip(outs, ref):
        assert got.shape == want.shape and got.dtype == want.dtype, (
            got.shape, got.dtype, want.shape, want.dtype)
        np.testing.assert_allclose(np.asarray(got), np.asarray(want),
                                   rtol=2e-3, atol=2e-3)

    print("KERNEL_OK")
</pallas_src>

<mosaic_0001>
module attributes {stable_mosaic.version = 11 : i64} {
  func.func @_dcc_head_kernel(%arg0: i32, %arg1: memref<2x16x2048xbf16, #tpu.memory_space<vmem>>, %arg2: memref<2048x256xbf16, #tpu.memory_space<vmem>>, %arg3: memref<1x256xf32, #tpu.memory_space<vmem>>, %arg4: memref<256x128xbf16, #tpu.memory_space<vmem>>, %arg5: memref<1x128xf32, #tpu.memory_space<vmem>>, %arg6: memref<2x2048xf32, #tpu.memory_space<vmem>>, %arg7: memref<2x256xf32, #tpu.memory_space<vmem>>, %arg8: memref<2x128xf32, #tpu.memory_space<vmem>>, %arg9: memref<2x128xf32, #tpu.memory_space<vmem>>) attributes {dimension_semantics = [#tpu.dimension_semantics<parallel>], iteration_bounds = array<i64: 1>, scalar_prefetch = 0 : i64, scratch_operands = 0 : i64, tpu.core_type = #tpu.core_type<tc>, window_params = [{transform_indices = @transform_0, window_bounds = array<i64: 2, 16, 2048>}, {pipeline_mode = #tpu.pipeline_mode<synchronous>, transform_indices = @transform_1, window_bounds = array<i64: 2048, 256>}, {pipeline_mode = #tpu.pipeline_mode<synchronous>, transform_indices = @transform_2, window_bounds = array<i64: 1, 256>}, {pipeline_mode = #tpu.pipeline_mode<synchronous>, transform_indices = @transform_3, window_bounds = array<i64: 256, 128>}, {pipeline_mode = #tpu.pipeline_mode<synchronous>, transform_indices = @transform_4, window_bounds = array<i64: 1, 128>}, {transform_indices = @transform_5, window_bounds = array<i64: 2, 2048>}, {transform_indices = @transform_6, window_bounds = array<i64: 2, 256>}, {transform_indices = @transform_7, window_bounds = array<i64: 2, 128>}, {transform_indices = @transform_8, window_bounds = array<i64: 2, 128>}]} {
    %c0 = arith.constant 0 : index
    %c0_0 = arith.constant 0 : index
    %c0_1 = arith.constant 0 : index
    %0 = vector.load %arg1[%c0, %c0_0, %c0_1] : memref<2x16x2048xbf16, #tpu.memory_space<vmem>>, vector<2x16x2048xbf16>
    %1 = arith.extf %0 : vector<2x16x2048xbf16> to vector<2x16x2048xf32>
    %cst = arith.constant dense<0.000000e+00> : vector<2x2048xf32>
    %2 = vector.multi_reduction <add>, %1, %cst [1] : vector<2x16x2048xf32> to vector<2x2048xf32>
    %cst_2 = arith.constant 1.600000e+01 : f32
    %3 = vector.broadcast %cst_2 : f32 to vector<2x2048xf32>
    %4 = arith.divf %2, %3 : vector<2x2048xf32>
    %c0_3 = arith.constant 0 : index
    %c0_4 = arith.constant 0 : index
    %5 = vector.load %arg6[%c0_3, %c0_4] : memref<2x2048xf32, #tpu.memory_space<vmem>>, vector<2x2048xf32>
    tpu.vector_store %arg6[%c0_3, %c0_4], %4 {strides = array<i32>} : memref<2x2048xf32, #tpu.memory_space<vmem>>, vector<2x2048xf32>,
    %6 = arith.truncf %4 : vector<2x2048xf32> to vector<2x2048xbf16>
    %c0_5 = arith.constant 0 : index
    %c0_6 = arith.constant 0 : index
    %7 = vector.load %arg2[%c0_5, %c0_6] : memref<2048x256xbf16, #tpu.memory_space<vmem>>, vector<2048x256xbf16>
    %cst_7 = arith.constant dense<0.000000e+00> : vector<2x256xf32>
    %8 = tpu.matmul %6, %7, %cst_7 {dimension_numbers = #tpu.dot_dimension_numbers<[1], [0], [0], [1], [0, 0, 1, 1], [], []>} : vector<2x2048xbf16>, vector<2048x256xbf16>, vector<2x256xf32> -> vector<2x256xf32>
    %c0_8 = arith.constant 0 : index
    %c0_9 = arith.constant 0 : index
    %9 = vector.load %arg3[%c0_8, %c0_9] : memref<1x256xf32, #tpu.memory_space<vmem>>, vector<1x256xf32>
    %10 = vector.broadcast %9 : vector<1x256xf32> to vector<2x256xf32>
    %11 = arith.addf %8, %10 : vector<2x256xf32>
    %c0_10 = arith.constant 0 : index
    %c0_11 = arith.constant 0 : index
    %12 = vector.load %arg7[%c0_10, %c0_11] : memref<2x256xf32, #tpu.memory_space<vmem>>, vector<2x256xf32>
    tpu.vector_store %arg7[%c0_10, %c0_11], %11 {strides = array<i32>} : memref<2x256xf32, #tpu.memory_space<vmem>>, vector<2x256xf32>,
    %13 = arith.truncf %11 : vector<2x256xf32> to vector<2x256xbf16>
    %c0_12 = arith.constant 0 : index
    %c0_13 = arith.constant 0 : index
    %14 = vector.load %arg4[%c0_12, %c0_13] : memref<256x128xbf16, #tpu.memory_space<vmem>>, vector<256x128xbf16>
    %cst_14 = arith.constant dense<0.000000e+00> : vector<2x128xf32>
    %15 = tpu.matmul %13, %14, %cst_14 {dimension_numbers = #tpu.dot_dimension_numbers<[1], [0], [0], [1], [0, 0, 1, 1], [], []>} : vector<2x256xbf16>, vector<256x128xbf16>, vector<2x128xf32> -> vector<2x128xf32>
    %c0_15 = arith.constant 0 : index
    %c0_16 = arith.constant 0 : index
    %16 = vector.load %arg5[%c0_15, %c0_16] : memref<1x128xf32, #tpu.memory_space<vmem>>, vector<1x128xf32>
    %17 = vector.broadcast %16 : vector<1x128xf32> to vector<2x128xf32>
    %18 = arith.addf %15, %17 : vector<2x128xf32>
    %c0_17 = arith.constant 0 : index
    %c0_18 = arith.constant 0 : index
    %19 = vector.load %arg8[%c0_17, %c0_18] : memref<2x128xf32, #tpu.memory_space<vmem>>, vector<2x128xf32>
    tpu.vector_store %arg8[%c0_17, %c0_18], %18 {strides = array<i32>} : memref<2x128xf32, #tpu.memory_space<vmem>>, vector<2x128xf32>,
    %cst_19 = arith.constant dense<0xFF800000> : vector<2xf32>
    %20 = vector.multi_reduction <maximumf>, %18, %cst_19 [1] : vector<2x128xf32> to vector<2xf32>
    %21 = vector.shape_cast %20 : vector<2xf32> to vector<2x1xf32>
    %22 = vector.broadcast %21 : vector<2x1xf32> to vector<2x128xf32>
    %23 = arith.subf %18, %22 : vector<2x128xf32>
    %24 = math.exp %23 : vector<2x128xf32>
    %cst_20 = arith.constant dense<0.000000e+00> : vector<2xf32>
    %25 = vector.multi_reduction <add>, %24, %cst_20 [1] : vector<2x128xf32> to vector<2xf32>
    %26 = vector.shape_cast %25 : vector<2xf32> to vector<2x1xf32>
    %27 = vector.broadcast %26 : vector<2x1xf32> to vector<2x128xf32>
    %28 = arith.divf %24, %27 : vector<2x128xf32>
    %c0_21 = arith.constant 0 : index
    %c0_22 = arith.constant 0 : index
    %29 = vector.load %arg9[%c0_21, %c0_22] : memref<2x128xf32, #tpu.memory_space<vmem>>, vector<2x128xf32>
    tpu.vector_store %arg9[%c0_21, %c0_22], %28 {strides = array<i32>} : memref<2x128xf32, #tpu.memory_space<vmem>>, vector<2x128xf32>,
    return
  }
  func.func @transform_0(%arg0: i32) -> (i32, i32, i32) {
    %c0_i32 = arith.constant 0 : i32
    %c0_i32_0 = arith.constant 0 : i32
    %c0_i32_1 = arith.constant 0 : i32
    return %arg0, %c0_i32, %c0_i32_0 : i32, i32, i32
  }
  func.func @transform_1(%arg0: i32) -> (i32, i32) {
    %c0_i32 = arith.constant 0 : i32
    %c0_i32_0 = arith.constant 0 : i32
    %c0_i32_1 = arith.constant 0 : i32
    return %c0_i32, %c0_i32_0 : i32, i32
  }
  func.func @transform_2(%arg0: i32) -> (i32, i32) {
    %c0_i32 = arith.constant 0 : i32
    %c0_i32_0 = arith.constant 0 : i32
    %c0_i32_1 = arith.constant 0 : i32
    return %c0_i32, %c0_i32_0 : i32, i32
  }
  func.func @transform_3(%arg0: i32) -> (i32, i32) {
    %c0_i32 = arith.constant 0 : i32
    %c0_i32_0 = arith.constant 0 : i32
    %c0_i32_1 = arith.constant 0 : i32
    return %c0_i32, %c0_i32_0 : i32, i32
  }
  func.func @transform_4(%arg0: i32) -> (i32, i32) {
    %c0_i32 = arith.constant 0 : i32
    %c0_i32_0 = arith.constant 0 : i32
    %c0_i32_1 = arith.constant 0 : i32
    return %c0_i32, %c0_i32_0 : i32, i32
  }
  func.func @transform_5(%arg0: i32) -> (i32, i32) {
    %c0_i32 = arith.constant 0 : i32
    %c0_i32_0 = arith.constant 0 : i32
    return %arg0, %c0_i32 : i32, i32
  }
  func.func @transform_6(%arg0: i32) -> (i32, i32) {
    %c0_i32 = arith.constant 0 : i32
    %c0_i32_0 = arith.constant 0 : i32
    return %arg0, %c0_i32 : i32, i32
  }
  func.func @transform_7(%arg0: i32) -> (i32, i32) {
    %c0_i32 = arith.constant 0 : i32
    %c0_i32_0 = arith.constant 0 : i32
    return %arg0, %c0_i32 : i32, i32
  }
  func.func @transform_8(%arg0: i32) -> (i32, i32) {
    %c0_i32 = arith.constant 0 : i32
    %c0_i32_0 = arith.constant 0 : i32
    return %arg0, %c0_i32 : i32, i32
  }
}

</mosaic_0001>

<llo_original>
// kernel: tpu_custom_call.1
$region0: #{tpu_custom_call.1}
  #allocation0 [shape = 'u32[]', space=smem, size = 0x4, offset = 0x4, fixed_abs, tag = 'smem constant byte address 0x4 - core index']
  #allocation1 [shape = 'u32[144,128]{1,0:T(1,128)}', space=vmem, size = 0x12000, scoped, tag = 'internal scratch']
  %s0 = inlined_call_operand.hbm [shape: bf16[2,16,2048], index: 0, kind: input, shape index: {}]
  %s1 = inlined_call_operand.hbm [shape: bf16[2048,256], index: 1, kind: input, shape index: {}]
  %s2 = inlined_call_operand.vmem [shape: f32[1,256], index: 2, kind: input, shape index: {}]
  %s3 = inlined_call_operand.hbm [shape: bf16[256,128], index: 3, kind: input, shape index: {}]
  %s4 = inlined_call_operand.vmem [shape: f32[1,128], index: 4, kind: input, shape index: {}]
  %s5 = inlined_call_operand.hbm [shape: f32[2,2048], index: 5, kind: output, shape index: {0}]
  %s6 = inlined_call_operand.hbm [shape: f32[2,256], index: 6, kind: output, shape index: {1}]
  %s7 = inlined_call_operand.hbm [shape: f32[2,128], index: 7, kind: output, shape index: {2}]
  %s8 = inlined_call_operand.hbm [shape: f32[2,128], index: 8, kind: output, shape index: {3}]
  %9 = xla_tuple %s5, %s6, %s7, %s8
  %s10 = sld [smem:[#allocation0]]
  $region66: #{tpu_custom_call.1} parent=0
    _
  %s12 = ssub.s32 1, %s10
  %s13 = scalar_select 0, %s12, %s10
  $region1: #{tpu_custom_call.1} parent=0
    #allocation2 [shape = 'u8[131072]{0}', space=vmem, size = 0x20000, scoped, tag = 'input window, operand 0, single buffered']
    #allocation3 [shape = 's32[1]{0}', space=sflag, size = 0x4, scoped, tag = 'scoped memory for tpu_custom_call.1']
    #allocation4 [shape = 's32[1]{0}', space=sflag, size = 0x4, scoped, tag = 'scoped memory for tpu_custom_call.1']
    #allocation5 [shape = 'u8[1048576]{0}', space=vmem, size = 0x100000, scoped, tag = 'input window, operand 1, single buffered']
    #allocation6 [shape = 's32[1]{0}', space=sflag, size = 0x4, scoped, tag = 'scoped memory for tpu_custom_call.1']
    #allocation7 [shape = 'u8[65536]{0}', space=vmem, size = 0x10000, scoped, tag = 'input window, operand 3, single buffered']
    #allocation8 [shape = 'u8[16384]{0}', space=vmem, size = 0x4000, scoped, tag = 'output window, operand 0, single buffered']
    #allocation9 [shape = 'u8[2048]{0}', space=vmem, size = 0x800, scoped, tag = 'output window, operand 1, single buffered']
    #allocation10 [shape = 's32[1]{0}', space=sflag, size = 0x4, scoped, tag = 'scoped memory for tpu_custom_call.1']
    #allocation11 [shape = 'u8[1024]{0}', space=vmem, size = 0x400, scoped, tag = 'output window, operand 2, single buffered']
    #allocation12 [shape = 'u8[1024]{0}', space=vmem, size = 0x400, scoped, tag = 'output window, operand 3, single buffered']
    #allocation13 [shape = 's32[1]{0}', space=sflag, size = 0x4, scoped, tag = 'scoped memory for tpu_custom_call.1']
    %14 = vsyncpa [#allocation3], 0
    %15 = vsyncpa [#allocation6], 0
    %16 = vsyncpa [#allocation4], 0
    %17 = vsyncpa [#allocation10], 0
    %18 = vsyncpa [#allocation13], 0
    // Predicated region
    $region2: #{tpu_custom_call.1} parent=1 // pred_check
      _
    $region3: #{tpu_custom_call.1} parent=1 // pred_check_branch
      %20 = sbr.rel (0) target = $region5
    $region4: #{tpu_custom_call.1} parent=1 // pred_region
      %s22 = ssub.s32 4096, 4096
      %23 = vsyncadd [#allocation3], %s22
      %s24 = sshll.u32 [#allocation2], 4
      %s25 = int_to_ptr.vmem [resolvable:$true] %s24
      %30 = dma.hbm_to_vmem [thread:$0]  %s0, 4096, %s25, [#allocation3], 1024, 1024, 64
    $region5: #{tpu_custom_call.1} parent=1 // pred_fallthru
      _
    // Predicated region
    $region6: #{tpu_custom_call.1} parent=1 // pred_check
      _
    $region7: #{tpu_custom_call.1} parent=1 // pred_check_branch
      %32 = sbr.rel (0) target = $region9
    $region8: #{tpu_custom_call.1} parent=1 // pred_region
      %s34 = ssub.s32 32768, 32768
      %35 = vsyncadd [#allocation6], %s34
      %s36 = sshll.u32 [#allocation5], 4
      %s37 = int_to_ptr.vmem [resolvable:$true] %s36
      %42 = dma.hbm_to_vmem [thread:$0]  %s1, 32768, %s37, [#allocation6], 128, 128, 8
    $region9: #{tpu_custom_call.1} parent=1 // pred_fallthru
      _
    // Predicated region
    $region10: #{tpu_custom_call.1} parent=1 // pred_check
      _
    $region11: #{tpu_custom_call.1} parent=1 // pred_check_branch
      %44 = sbr.rel (0) target = $region13
    $region12: #{tpu_custom_call.1} parent=1 // pred_region
      _
    $region13: #{tpu_custom_call.1} parent=1 // pred_fallthru
      _
    // Predicated region
    $region14: #{tpu_custom_call.1} parent=1 // pred_check
      _
    $region15: #{tpu_custom_call.1} parent=1 // pred_check_branch
      %46 = sbr.rel (0) target = $region17
    $region16: #{tpu_custom_call.1} parent=1 // pred_region
      %s48 = ssub.s32 2048, 2048
      %49 = vsyncadd [#allocation6], %s48
      %s50 = sshll.u32 [#allocation7], 4
      %s51 = int_to_ptr.vmem [resolvable:$true] %s50
      %56 = dma.hbm_to_vmem [thread:$0]  %s3, 2048, %s51, [#allocation6], 64, 64, 4
    $region17: #{tpu_custom_call.1} parent=1 // pred_fallthru
      _
    // Predicated region
    $region18: #{tpu_custom_call.1} parent=1 // pred_check
      _
    $region19: #{tpu_custom_call.1} parent=1 // pred_check_branch
      %58 = sbr.rel (0) target = $region21
    $region20: #{tpu_custom_call.1} parent=1 // pred_region
      _
    $region21: #{tpu_custom_call.1} parent=1 // pred_fallthru
      _
    // Predicated region
    $region22: #{tpu_custom_call.1} parent=1 // pred_check
      _
    $region23: #{tpu_custom_call.1} parent=1 // pred_check_branch
      %60 = sbr.rel (0) target = $region25
    $region24: #{tpu_custom_call.1} parent=1 // pred_region
      %61 = dma.done [#allocation3], 4096
    $region25: #{tpu_custom_call.1} parent=1 // pred_fallthru
      _
    // Predicated region
    $region26: #{tpu_custom_call.1} parent=1 // pred_check
      _
    $region27: #{tpu_custom_call.1} parent=1 // pred_check_branch
      %63 = sbr.rel (0) target = $region29
    $region28: #{tpu_custom_call.1} parent=1 // pred_region
      %64 = dma.done [#allocation6], 32768
    $region29: #{tpu_custom_call.1} parent=1 // pred_fallthru
      _
    // Predicated region
    $region30: #{tpu_custom_call.1} parent=1 // pred_check
      _
    $region31: #{tpu_custom_call.1} parent=1 // pred_check_branch
      %66 = sbr.rel (0) target = $region33
    $region32: #{tpu_custom_call.1} parent=1 // pred_region
      %67 = dma.done [#allocation6], 2048
    $region33: #{tpu_custom_call.1} parent=1 // pred_fallthru
      _
    %v69 = vld [vmem:[#allocation2] sm:$0xff]
    %v70 = vld [vmem:[#allocation2 + $0x8] sm:$0xff]
    %v71 = vld [vmem:[#allocation2 + $0x10] sm:$0xff]
    %v72 = vld [vmem:[#allocation2 + $0x18] sm:$0xff]
    %v73 = vld [vmem:[#allocation2 + $0x20] sm:$0xff]
    %v74 = vld [vmem:[#allocation2 + $0x28] sm:$0xff]
    %v75 = vld [vmem:[#allocation2 + $0x30] sm:$0xff]
    %v76 = vld [vmem:[#allocation2 + $0x38] sm:$0xff]
    %v77 = vld [vmem:[#allocation2 + $0x40] sm:$0xff]
    %v78 = vld [vmem:[#allocation2 + $0x48] sm:$0xff]
    %v79 = vld [vmem:[#allocation2 + $0x50] sm:$0xff]
    %v80 = vld [vmem:[#allocation2 + $0x58] sm:$0xff]
    %v81 = vld [vmem:[#allocation2 + $0x60] sm:$0xff]
    %v82 = vld [vmem:[#allocation2 + $0x68] sm:$0xff]
    %v83 = vld [vmem:[#allocation2 + $0x70] sm:$0xff]
    %v84 = vld [vmem:[#allocation2 + $0x78] sm:$0xff]
    %v85 = vld [vmem:[#allocation2 + $0x80] sm:$0xff]
    %v86 = vld [vmem:[#allocation2 + $0x88] sm:$0xff]
    %v87 = vld [vmem:[#allocation2 + $0x90] sm:$0xff]
    %v88 = vld [vmem:[#allocation2 + $0x98] sm:$0xff]
    %v89 = vld [vmem:[#allocation2 + $0xa0] sm:$0xff]
    %v90 = vld [vmem:[#allocation2 + $0xa8] sm:$0xff]
    %v91 = vld [vmem:[#allocation2 + $0xb0] sm:$0xff]
    %v92 = vld [vmem:[#allocation2 + $0xb8] sm:$0xff]
    %v93 = vld [vmem:[#allocation2 + $0xc0] sm:$0xff]
    %v94 = vld [vmem:[#allocation2 + $0xc8] sm:$0xff]
    %v95 = vld [vmem:[#allocation2 + $0xd0] sm:$0xff]
    %v96 = vld [vmem:[#allocation2 + $0xd8] sm:$0xff]
    %v97 = vld [vmem:[#allocation2 + $0xe0] sm:$0xff]
    %v98 = vld [vmem:[#allocation2 + $0xe8] sm:$0xff]
    %v99 = vld [vmem:[#allocation2 + $0xf0] sm:$0xff]
    %v100 = vld [vmem:[#allocation2 + $0xf8] sm:$0xff]
    %v101 = vunpack.c.l.bf16 %v69
    %v102 = vunpack.c.h.bf16 %v69
    %v103 = vunpack.c.l.bf16 %v70
    %v104 = vunpack.c.h.bf16 %v70
    %v105 = vunpack.c.l.bf16 %v71
    %v106 = vunpack.c.h.bf16 %v71
    %v107 = vunpack.c.l.bf16 %v72
    %v108 = vunpack.c.h.bf16 %v72
    %v109 = vunpack.c.l.bf16 %v73
    %v110 = vunpack.c.h.bf16 %v73
    %v111 = vunpack.c.l.bf16 %v74
    %v112 = vunpack.c.h.bf16 %v74
    %v113 = vunpack.c.l.bf16 %v75
    %v114 = vunpack.c.h.bf16 %v75
    %v115 = vunpack.c.l.bf16 %v76
    %v116 = vunpack.c.h.bf16 %v76
    %v117 = vunpack.c.l.bf16 %v77
    %v118 = vunpack.c.h.bf16 %v77
    %v119 = vunpack.c.l.bf16 %v78
    %v120 = vunpack.c.h.bf16 %v78
    %v121 = vunpack.c.l.bf16 %v79
    %v122 = vunpack.c.h.bf16 %v79
    %v123 = vunpack.c.l.bf16 %v80
    %v124 = vunpack.c.h.bf16 %v80
    %v125 = vunpack.c.l.bf16 %v81
    %v126 = vunpack.c.h.bf16 %v81
    %v127 = vunpack.c.l.bf16 %v82
    %v128 = vunpack.c.h.bf16 %v82
    %v129 = vunpack.c.l.bf16 %v83
    %v130 = vunpack.c.h.bf16 %v83
    %v131 = vunpack.c.l.bf16 %v84
    %v132 = vunpack.c.h.bf16 %v84
    %v133 = vunpack.c.l.bf16 %v85
    %v134 = vunpack.c.h.bf16 %v85
    %v135 = vunpack.c.l.bf16 %v86
    %v136 = vunpack.c.h.bf16 %v86
    %v137 = vunpack.c.l.bf16 %v87
    %v138 = vunpack.c.h.bf16 %v87
    %v139 = vunpack.c.l.bf16 %v88
    %v140 = vunpack.c.h.bf16 %v88
    %v141 = vunpack.c.l.bf16 %v89
    %v142 = vunpack.c.h.bf16 %v89
    %v143 = vunpack.c.l.bf16 %v90
    %v144 = vunpack.c.h.bf16 %v90
    %v145 = vunpack.c.l.bf16 %v91
    %v146 = vunpack.c.h.bf16 %v91
    %v147 = vunpack.c.l.bf16 %v92
    %v148 = vunpack.c.h.bf16 %v92
    %v149 = vunpack.c.l.bf16 %v93
    %v150 = vunpack.c.h.bf16 %v93
    %v151 = vunpack.c.l.bf16 %v94
    %v152 = vunpack.c.h.bf16 %v94
    %v153 = vunpack.c.l.bf16 %v95
    %v154 = vunpack.c.h.bf16 %v95
    %v155 = vunpack.c.l.bf16 %v96
    %v156 = vunpack.c.h.bf16 %v96
    %v157 = vunpack.c.l.bf16 %v97
    %v158 = vunpack.c.h.bf16 %v97
    %v159 = vunpack.c.l.bf16 %v98
    %v160 = vunpack.c.h.bf16 %v98
    %v161 = vunpack.c.l.bf16 %v99
    %v162 = vunpack.c.h.bf16 %v99
    %v163 = vunpack.c.l.bf16 %v100
    %v164 = vunpack.c.h.bf16 %v100
    %v165 = vadd.f32 %v101, %v117
    %v166 = vrot.slane %v165, 4
    %v167 = vadd.f32 %v165, %v166
    %v168 = vrot.slane %v167, 2
    %v169 = vadd.f32 %v167, %v168
    %v170 = vrot.slane %v169, 1
    %v171 = vadd.f32 %v169, %v170
    %v172 = vadd.f32 %v102, %v118
    %v173 = vrot.slane %v172, 4
    %v174 = vadd.f32 %v172, %v173
    %v175 = vrot.slane %v174, 2
    %v176 = vadd.f32 %v174, %v175
    %v177 = vrot.slane %v176, 1
    %v178 = vadd.f32 %v176, %v177
    %v179 = vadd.f32 %v103, %v119
    %v180 = vrot.slane %v179, 4
    %v181 = vadd.f32 %v179, %v180
    %v182 = vrot.slane %v181, 2
    %v183 = vadd.f32 %v181, %v182
    %v184 = vrot.slane %v183, 1
    %v185 = vadd.f32 %v183, %v184
    %v186 = vadd.f32 %v104, %v120
    %v187 = vrot.slane %v186, 4
    %v188 = vadd.f32 %v186, %v187
    %v189 = vrot.slane %v188, 2
    %v190 = vadd.f32 %v188, %v189
    %v191 = vrot.slane %v190, 1
    %v192 = vadd.f32 %v190, %v191
    %v193 = vadd.f32 %v105, %v121
    %v194 = vrot.slane %v193, 4
    %v195 = vadd.f32 %v193, %v194
    %v196 = vrot.slane %v195, 2
    %v197 = vadd.f32 %v195, %v196
    %v198 = vrot.slane %v197, 1
    %v199 = vadd.f32 %v197, %v198
    %v200 = vadd.f32 %v106, %v122
    %v201 = vrot.slane %v200, 4
    %v202 = vadd.f32 %v200, %v201
    %v203 = vrot.slane %v202, 2
    %v204 = vadd.f32 %v202, %v203
    %v205 = vrot.slane %v204, 1
    %v206 = vadd.f32 %v204, %v205
    %v207 = vadd.f32 %v107, %v123
    %v208 = vrot.slane %v207, 4
    %v209 = vadd.f32 %v207, %v208
    %v210 = vrot.slane %v209, 2
    %v211 = vadd.f32 %v209, %v210
    %v212 = vrot.slane %v211, 1
    %v213 = vadd.f32 %v211, %v212
    %v214 = vadd.f32 %v108, %v124
    %v215 = vrot.slane %v214, 4
    %v216 = vadd.f32 %v214, %v215
    %v217 = vrot.slane %v216, 2
    %v218 = vadd.f32 %v216, %v217
    %v219 = vrot.slane %v218, 1
    %v220 = vadd.f32 %v218, %v219
    %v221 = vadd.f32 %v109, %v125
    %v222 = vrot.slane %v221, 4
    %v223 = vadd.f32 %v221, %v222
    %v224 = vrot.slane %v223, 2
    %v225 = vadd.f32 %v223, %v224
    %v226 = vrot.slane %v225, 1
    %v227 = vadd.f32 %v225, %v226
    %v228 = vadd.f32 %v110, %v126
    %v229 = vrot.slane %v228, 4
    %v230 = vadd.f32 %v228, %v229
    %v231 = vrot.slane %v230, 2
    %v232 = vadd.f32 %v230, %v231
    %v233 = vrot.slane %v232, 1
    %v234 = vadd.f32 %v232, %v233
    %v235 = vadd.f32 %v111, %v127
    %v236 = vrot.slane %v235, 4
    %v237 = vadd.f32 %v235, %v236
    %v238 = vrot.slane %v237, 2
    %v239 = vadd.f32 %v237, %v238
    %v240 = vrot.slane %v239, 1
    %v241 = vadd.f32 %v239, %v240
    %v242 = vadd.f32 %v112, %v128
    %v243 = vrot.slane %v242, 4
    %v244 = vadd.f32 %v242, %v243
    %v245 = vrot.slane %v244, 2
    %v246 = vadd.f32 %v244, %v245
    %v247 = vrot.slane %v246, 1
    %v248 = vadd.f32 %v246, %v247
    %v249 = vadd.f32 %v113, %v129
    %v250 = vrot.slane %v249, 4
    %v251 = vadd.f32 %v249, %v250
    %v252 = vrot.slane %v251, 2
    %v253 = vadd.f32 %v251, %v252
    %v254 = vrot.slane %v253, 1
    %v255 = vadd.f32 %v253, %v254
    %v256 = vadd.f32 %v114, %v130
    %v257 = vrot.slane %v256, 4
    %v258 = vadd.f32 %v256, %v257
    %v259 = vrot.slane %v258, 2
    %v260 = vadd.f32 %v258, %v259
    %v261 = vrot.slane %v260, 1
    %v262 = vadd.f32 %v260, %v261
    %v263 = vadd.f32 %v115, %v131
    %v264 = vrot.slane %v263, 4
    %v265 = vadd.f32 %v263, %v264
    %v266 = vrot.slane %v265, 2
    %v267 = vadd.f32 %v265, %v266
    %v268 = vrot.slane %v267, 1
    %v269 = vadd.f32 %v267, %v268
    %v270 = vadd.f32 %v116, %v132
    %v271 = vrot.slane %v270, 4
    %v272 = vadd.f32 %v270, %v271
    %v273 = vrot.slane %v272, 2
    %v274 = vadd.f32 %v272, %v273
    %v275 = vrot.slane %v274, 1
    %v276 = vadd.f32 %v274, %v275
    %v277 = vadd.f32 %v133, %v149
    %v278 = vrot.slane %v277, 4
    %v279 = vadd.f32 %v277, %v278
    %v280 = vrot.slane %v279, 2
    %v281 = vadd.f32 %v279, %v280
    %v282 = vrot.slane %v281, 1
    %v283 = vadd.f32 %v281, %v282
    %v284 = vadd.f32 %v134, %v150
    %v285 = vrot.slane %v284, 4
    %v286 = vadd.f32 %v284, %v285
    %v287 = vrot.slane %v286, 2
    %v288 = vadd.f32 %v286, %v287
    %v289 = vrot.slane %v288, 1
    %v290 = vadd.f32 %v288, %v289
    %v291 = vadd.f32 %v135, %v151
    %v292 = vrot.slane %v291, 4
    %v293 = vadd.f32 %v291, %v292
    %v294 = vrot.slane %v293, 2
    %v295 = vadd.f32 %v293, %v294
    %v296 = vrot.slane %v295, 1
    %v297 = vadd.f32 %v295, %v296
    %v298 = vadd.f32 %v136, %v152
    %v299 = vrot.slane %v298, 4
    %v300 = vadd.f32 %v298, %v299
    %v301 = vrot.slane %v300, 2
    %v302 = vadd.f32 %v300, %v301
    %v303 = vrot.slane %v302, 1
    %v304 = vadd.f32 %v302, %v303
    %v305 = vadd.f32 %v137, %v153
    %v306 = vrot.slane %v305, 4
    %v307 = vadd.f32 %v305, %v306
    %v308 = vrot.slane %v307, 2
    %v309 = vadd.f32 %v307, %v308
    %v310 = vrot.slane %v309, 1
    %v311 = vadd.f32 %v309, %v310
    %v312 = vadd.f32 %v138, %v154
    %v313 = vrot.slane %v312, 4
    %v314 = vadd.f32 %v312, %v313
    %v315 = vrot.slane %v314, 2
    %v316 = vadd.f32 %v314, %v315
    %v317 = vrot.slane %v316, 1
    %v318 = vadd.f32 %v316, %v317
    %v319 = vadd.f32 %v139, %v155
    %v320 = vrot.slane %v319, 4
    %v321 = vadd.f32 %v319, %v320
    %v322 = vrot.slane %v321, 2
    %v323 = vadd.f32 %v321, %v322
    %v324 = vrot.slane %v323, 1
    %v325 = vadd.f32 %v323, %v324
    %v326 = vadd.f32 %v140, %v156
    %v327 = vrot.slane %v326, 4
    %v328 = vadd.f32 %v326, %v327
    %v329 = vrot.slane %v328, 2
    %v330 = vadd.f32 %v328, %v329
    %v331 = vrot.slane %v330, 1
    %v332 = vadd.f32 %v330, %v331
    %v333 = vadd.f32 %v141, %v157
    %v334 = vrot.slane %v333, 4
    %v335 = vadd.f32 %v333, %v334
    %v336 = vrot.slane %v335, 2
    %v337 = vadd.f32 %v335, %v336
    %v338 = vrot.slane %v337, 1
    %v339 = vadd.f32 %v337, %v338
    %v340 = vadd.f32 %v142, %v158
    %v341 = vrot.slane %v340, 4
    %v342 = vadd.f32 %v340, %v341
    %v343 = vrot.slane %v342, 2
    %v344 = vadd.f32 %v342, %v343
    %v345 = vrot.slane %v344, 1
    %v346 = vadd.f32 %v344, %v345
    %v347 = vadd.f32 %v143, %v159
    %v348 = vrot.slane %v347, 4
    %v349 = vadd.f32 %v347, %v348
    %v350 = vrot.slane %v349, 2
    %v351 = vadd.f32 %v349, %v350
    %v352 = vrot.slane %v351, 1
    %v353 = vadd.f32 %v351, %v352
    %v354 = vadd.f32 %v144, %v160
    %v355 = vrot.slane %v354, 4
    %v356 = vadd.f32 %v354, %v355
    %v357 = vrot.slane %v356, 2
    %v358 = vadd.f32 %v356, %v357
    %v359 = vrot.slane %v358, 1
    %v360 = vadd.f32 %v358, %v359
    %v361 = vadd.f32 %v145, %v161
    %v362 = vrot.slane %v361, 4
    %v363 = vadd.f32 %v361, %v362
    %v364 = vrot.slane %v363, 2
    %v365 = vadd.f32 %v363, %v364
    %v366 = vrot.slane %v365, 1
    %v367 = vadd.f32 %v365, %v366
    %v368 = vadd.f32 %v146, %v162
    %v369 = vrot.slane %v368, 4
    %v370 = vadd.f32 %v368, %v369
    %v371 = vrot.slane %v370, 2
    %v372 = vadd.f32 %v370, %v371
    %v373 = vrot.slane %v372, 1
    %v374 = vadd.f32 %v372, %v373
    %v375 = vadd.f32 %v147, %v163
    %v376 = vrot.slane %v375, 4
    %v377 = vadd.f32 %v375, %v376
    %v378 = vrot.slane %v377, 2
    %v379 = vadd.f32 %v377, %v378
    %v380 = vrot.slane %v379, 1
    %v381 = vadd.f32 %v379, %v380
    %v382 = vadd.f32 %v148, %v164
    %v383 = vrot.slane %v382, 4
    %v384 = vadd.f32 %v382, %v383
    %v385 = vrot.slane %v384, 2
    %v386 = vadd.f32 %v384, %v385
    %v387 = vrot.slane %v386, 1
    %v388 = vadd.f32 %v386, %v387
    %v389 = vrcp.pop 16.0
    %v390 = vmul.f32 %v171, %v389
    %v391 = vmul.f32 %v178, %v389
    %v392 = vmul.f32 %v185, %v389
    %v393 = vmul.f32 %v192, %v389
    %v394 = vmul.f32 %v199, %v389
    %v395 = vmul.f32 %v206, %v389
    %v396 = vmul.f32 %v213, %v389
    %v397 = vmul.f32 %v220, %v389
    %v398 = vmul.f32 %v227, %v389
    %v399 = vmul.f32 %v234, %v389
    %v400 = vmul.f32 %v241, %v389
    %v401 = vmul.f32 %v248, %v389
    %v402 = vmul.f32 %v255, %v389
    %v403 = vmul.f32 %v262, %v389
    %v404 = vmul.f32 %v269, %v389
    %v405 = vmul.f32 %v276, %v389
    %v406 = vmul.f32 %v283, %v389
    %v407 = vmul.f32 %v290, %v389
    %v408 = vmul.f32 %v297, %v389
    %v409 = vmul.f32 %v304, %v389
    %v410 = vmul.f32 %v311, %v389
    %v411 = vmul.f32 %v318, %v389
    %v412 = vmul.f32 %v325, %v389
    %v413 = vmul.f32 %v332, %v389
    %v414 = vmul.f32 %v339, %v389
    %v415 = vmul.f32 %v346, %v389
    %v416 = vmul.f32 %v353, %v389
    %v417 = vmul.f32 %v360, %v389
    %v418 = vmul.f32 %v367, %v389
    %v419 = vmul.f32 %v374, %v389
    %v420 = vmul.f32 %v381, %v389
    %v421 = vmul.f32 %v388, %v389
    %v454 = vcombine.low %v390, %v391
    %v455 = vcombine.low %v392, %v393
    %v457 = vunpack.c.l.s4 1983009808
    %v458 = vunpack.c.0.s8 %v457
    %v459 = vlaneseq
    %v460 = vshrl.u32 %v459, 7
    %v461 = vsub.s32 %v458, %v460
    %v462 = vrot.slane %v454, %v461
    %v464 = vunpack.c.l.s4 1983009808
    %v465 = vunpack.c.0.s8 %v464
    %v466 = vlaneseq
    %v467 = vshrl.u32 %v466, 7
    %v468 = vsub.s32 %v465, %v467
    %v469 = vrot.slane %v455, %v468
    %v470 = vcombine.low %v462, %v469
    %v471 = vcombine.low %v394, %v395
    %v472 = vcombine.low %v396, %v397
    %v474 = vunpack.c.l.s4 1983009808
    %v475 = vunpack.c.0.s8 %v474
    %v476 = vlaneseq
    %v477 = vshrl.u32 %v476, 7
    %v478 = vsub.s32 %v475, %v477
    %v479 = vrot.slane %v471, %v478
    %v481 = vunpack.c.l.s4 1983009808
    %v482 = vunpack.c.0.s8 %v481
    %v483 = vlaneseq
    %v484 = vshrl.u32 %v483, 7
    %v485 = vsub.s32 %v482, %v484
    %v486 = vrot.slane %v472, %v485
    %v487 = vcombine.low %v479, %v486
    %v488 = vcombine.low %v398, %v399
    %v489 = vcombine.low %v400, %v401
    %v491 = vunpack.c.l.s4 1983009808
    %v492 = vunpack.c.0.s8 %v491
    %v493 = vlaneseq
    %v494 = vshrl.u32 %v493, 7
    %v495 = vsub.s32 %v492, %v494
    %v496 = vrot.slane %v488, %v495
    %v498 = vunpack.c.l.s4 1983009808
    %v499 = vunpack.c.0.s8 %v498
    %v500 = vlaneseq
    %v501 = vshrl.u32 %v500, 7
    %v502 = vsub.s32 %v499, %v501
    %v503 = vrot.slane %v489, %v502
    %v504 = vcombine.low %v496, %v503
    %v505 = vcombine.low %v402, %v403
    %v506 = vcombine.low %v404, %v405
    %v508 = vunpack.c.l.s4 1983009808
    %v509 = vunpack.c.0.s8 %v508
    %v510 = vlaneseq
    %v511 = vshrl.u32 %v510, 7
    %v512 = vsub.s32 %v509, %v511
    %v513 = vrot.slane %v505, %v512
    %v515 = vunpack.c.l.s4 1983009808
    %v516 = vunpack.c.0.s8 %v515
    %v517 = vlaneseq
    %v518 = vshrl.u32 %v517, 7
    %v519 = vsub.s32 %v516, %v518
    %v520 = vrot.slane %v506, %v519
    %v521 = vcombine.low %v513, %v520
    %v522 = vcombine.low %v406, %v407
    %v523 = vcombine.low %v408, %v409
    %v525 = vunpack.c.l.s4 1983009808
    %v526 = vunpack.c.0.s8 %v525
    %v527 = vlaneseq
    %v528 = vshrl.u32 %v527, 7
    %v529 = vsub.s32 %v526, %v528
    %v530 = vrot.slane %v522, %v529
    %v532 = vunpack.c.l.s4 1983009808
    %v533 = vunpack.c.0.s8 %v532
    %v534 = vlaneseq
    %v535 = vshrl.u32 %v534, 7
    %v536 = vsub.s32 %v533, %v535
    %v537 = vrot.slane %v523, %v536
    %v538 = vcombine.low %v530, %v537
    %v539 = vcombine.low %v410, %v411
    %v540 = vcombine.low %v412, %v413
    %v542 = vunpack.c.l.s4 1983009808
    %v543 = vunpack.c.0.s8 %v542
    %v544 = vlaneseq
    %v545 = vshrl.u32 %v544, 7
    %v546 = vsub.s32 %v543, %v545
    %v547 = vrot.slane %v539, %v546
    %v549 = vunpack.c.l.s4 1983009808
    %v550 = vunpack.c.0.s8 %v549
    %v551 = vlaneseq
    %v552 = vshrl.u32 %v551, 7
    %v553 = vsub.s32 %v550, %v552
    %v554 = vrot.slane %v540, %v553
    %v555 = vcombine.low %v547, %v554
    %v556 = vcombine.low %v414, %v415
    %v557 = vcombine.low %v416, %v417
    %v559 = vunpack.c.l.s4 1983009808
    %v560 = vunpack.c.0.s8 %v559
    %v561 = vlaneseq
    %v562 = vshrl.u32 %v561, 7
    %v563 = vsub.s32 %v560, %v562
    %v564 = vrot.slane %v556, %v563
    %v566 = vunpack.c.l.s4 1983009808
    %v567 = vunpack.c.0.s8 %v566
    %v568 = vlaneseq
    %v569 = vshrl.u32 %v568, 7
    %v570 = vsub.s32 %v567, %v569
    %v571 = vrot.slane %v557, %v570
    %v572 = vcombine.low %v564, %v571
    %v573 = vcombine.low %v418, %v419
    %v574 = vcombine.low %v420, %v421
    %v576 = vunpack.c.l.s4 1983009808
    %v577 = vunpack.c.0.s8 %v576
    %v578 = vlaneseq
    %v579 = vshrl.u32 %v578, 7
    %v580 = vsub.s32 %v577, %v579
    %v581 = vrot.slane %v573, %v580
    %v583 = vunpack.c.l.s4 1983009808
    %v584 = vunpack.c.0.s8 %v583
    %v585 = vlaneseq
    %v586 = vshrl.u32 %v585, 7
    %v587 = vsub.s32 %v584, %v586
    %v588 = vrot.slane %v574, %v587
    %v589 = vcombine.low %v581, %v588
    %vm590 = vcmask 1044484
    %v591 = vsel %vm590, %v470, %v470
    %vm592 = vcmask 1046534
    %v593 = vsel %vm592, %v470, %v591
    %v594 = vrot.slane %v538, 7
    %vm595 = vcmask 1041409
    %v596 = vsel %vm595, %v594, %v593
    %vm597 = vcmask 1043459
    %v598 = vsel %vm597, %v594, %v596
    %vm599 = vcmask 1045509
    %v600 = vsel %vm599, %v594, %v598
    %vm601 = vcmask 1047559
    %v602 = vsel %vm601, %v594, %v600
    %v603 = vsel %vm590, %v487, %v487
    %v604 = vsel %vm592, %v487, %v603
    %v605 = vrot.slane %v555, 7
    %v606 = vsel %vm595, %v605, %v604
    %v607 = vsel %vm597, %v605, %v606
    %v608 = vsel %vm599, %v605, %v607
    %v609 = vsel %vm601, %v605, %v608
    %v610 = vsel %vm590, %v504, %v504
    %v611 = vsel %vm592, %v504, %v610
    %v612 = vrot.slane %v572, 7
    %v613 = vsel %vm595, %v612, %v611
    %v614 = vsel %vm597, %v612, %v613
    %v615 = vsel %vm599, %v612, %v614
    %v616 = vsel %vm601, %v612, %v615
    %v617 = vsel %vm590, %v521, %v521
    %v618 = vsel %vm592, %v521, %v617
    %v619 = vrot.slane %v589, 7
    %v620 = vsel %vm595, %v619, %v618
    %v621 = vsel %vm597, %v619, %v620
    %v622 = vsel %vm599, %v619, %v621
    %v623 = vsel %vm601, %v619, %v622
    %628 = vst [vmem:[#allocation8] sm:$0xff] %v602
    %629 = vst [vmem:[#allocation8 + $0x8] sm:$0xff] %v609
    %630 = vst [vmem:[#allocation8 + $0x10] sm:$0xff] %v616
    %631 = vst [vmem:[#allocation8 + $0x18] sm:$0xff] %v623
    %v632 = vpack.c.bf16 %v390, %v390
    %v633 = vpack.c.bf16 %v391, %v391
    %v634 = vpack.c.bf16 %v392, %v392
    %v635 = vpack.c.bf16 %v393, %v393
    %v636 = vpack.c.bf16 %v394, %v394
    %v637 = vpack.c.bf16 %v395, %v395
    %v638 = vpack.c.bf16 %v396, %v396
    %v639 = vpack.c.bf16 %v397, %v397
    %v640 = vpack.c.bf16 %v398, %v398
    %v641 = vpack.c.bf16 %v399, %v399
    %v642 = vpack.c.bf16 %v400, %v400
    %v643 = vpack.c.bf16 %v401, %v401
    %v644 = vpack.c.bf16 %v402, %v402
    %v645 = vpack.c.bf16 %v403, %v403
    %v646 = vpack.c.bf16 %v404, %v404
    %v647 = vpack.c.bf16 %v405, %v405
    %v648 = vpack.c.bf16 %v406, %v406
    %v649 = vpack.c.bf16 %v407, %v407
    %v650 = vpack.c.bf16 %v408, %v408
    %v651 = vpack.c.bf16 %v409, %v409
    %v652 = vpack.c.bf16 %v410, %v410
    %v653 = vpack.c.bf16 %v411, %v411
    %v654 = vpack.c.bf16 %v412, %v412
    %v655 = vpack.c.bf16 %v413, %v413
    %v656 = vpack.c.bf16 %v414, %v414
    %v657 = vpack.c.bf16 %v415, %v415
    %v658 = vpack.c.bf16 %v416, %v416
    %v659 = vpack.c.bf16 %v417, %v417
    %v660 = vpack.c.bf16 %v418, %v418
    %v661 = vpack.c.bf16 %v419, %v419
    %v662 = vpack.c.bf16 %v420, %v420
    %v663 = vpack.c.bf16 %v421, %v421
    %v664 = vld [vmem:[#allocation5] sm:$0xff]
    %v665 = vld [vmem:[#allocation5 + $0x8] sm:$0xff]
    %v666 = vld [vmem:[#allocation5 + $0x10] sm:$0xff]
    %v667 = vld [vmem:[#allocation5 + $0x18] sm:$0xff]
    %v668 = vld [vmem:[#allocation5 + $0x20] sm:$0xff]
    %v669 = vld [vmem:[#allocation5 + $0x28] sm:$0xff]
    %v670 = vld [vmem:[#allocation5 + $0x30] sm:$0xff]
    %v671 = vld [vmem:[#allocation5 + $0x38] sm:$0xff]
    %v672 = vld [vmem:[#allocation5 + $0x40] sm:$0xff]
    %v673 = vld [vmem:[#allocation5 + $0x48] sm:$0xff]
    %v674 = vld [vmem:[#allocation5 + $0x50] sm:$0xff]
    %v675 = vld [vmem:[#allocation5 + $0x58] sm:$0xff]
    %v676 = vld [vmem:[#allocation5 + $0x60] sm:$0xff]
    %v677 = vld [vmem:[#allocation5 + $0x68] sm:$0xff]
    %v678 = vld [vmem:[#allocation5 + $0x70] sm:$0xff]
    %v679 = vld [vmem:[#allocation5 + $0x78] sm:$0xff]
    %v680 = vld [vmem:[#allocation5 + $0x80] sm:$0xff]
    %v681 = vld [vmem:[#allocation5 + $0x88] sm:$0xff]
    %v682 = vld [vmem:[#allocation5 + $0x90] sm:$0xff]
    %v683 = vld [vmem:[#allocation5 + $0x98] sm:$0xff]
    %v684 = vld [vmem:[#allocation5 + $0xa0] sm:$0xff]
    %v685 = vld [vmem:[#allocation5 + $0xa8] sm:$0xff]
    %v686 = vld [vmem:[#allocation5 + $0xb0] sm:$0xff]
    %v687 = vld [vmem:[#allocation5 + $0xb8] sm:$0xff]
    %v688 = vld [vmem:[#allocation5 + $0xc0] sm:$0xff]
    %v689 = vld [vmem:[#allocation5 + $0xc8] sm:$0xff]
    %v690 = vld [vmem:[#allocation5 + $0xd0] sm:$0xff]
    %v691 = vld [vmem:[#allocation5 + $0xd8] sm:$0xff]
    %v692 = vld [vmem:[#allocation5 + $0xe0] sm:$0xff]
    %v693 = vld [vmem:[#allocation5 + $0xe8] sm:$0xff]
    %v694 = vld [vmem:[#allocation5 + $0xf0] sm:$0xff]
    %v695 = vld [vmem:[#allocation5 + $0xf8] sm:$0xff]
    %v696 = vld [vmem:[#allocation5 + $0x100] sm:$0xff]
    %v697 = vld [vmem:[#allocation5 + $0x108] sm:$0xff]
    %v698 = vld [vmem:[#allocation5 + $0x110] sm:$0xff]
    %v699 = vld [vmem:[#allocation5 + $0x118] sm:$0xff]
    %v700 = vld [vmem:[#allocation5 + $0x120] sm:$0xff]
    %v701 = vld [vmem:[#allocation5 + $0x128] sm:$0xff]
    %v702 = vld [vmem:[#allocation5 + $0x130] sm:$0xff]
    %v703 = vld [vmem:[#allocation5 + $0x138] sm:$0xff]
    %v704 = vld [vmem:[#allocation5 + $0x140] sm:$0xff]
    %v705 = vld [vmem:[#allocation5 + $0x148] sm:$0xff]
    %v706 = vld [vmem:[#allocation5 + $0x150] sm:$0xff]
    %v707 = vld [vmem:[#allocation5 + $0x158] sm:$0xff]
    %v708 = vld [vmem:[#allocation5 + $0x160] sm:$0xff]
    %v709 = vld [vmem:[#allocation5 + $0x168] sm:$0xff]
    %v710 = vld [vmem:[#allocation5 + $0x170] sm:$0xff]
    %v711 = vld [vmem:[#allocation5 + $0x178] sm:$0xff]
    %v712 = vld [vmem:[#allocation5 + $0x180] sm:$0xff]
    %v713 = vld [vmem:[#allocation5 + $0x188] sm:$0xff]
    %v714 = vld [vmem:[#allocation5 + $0x190] sm:$0xff]
    %v715 = vld [vmem:[#allocation5 + $0x198] sm:$0xff]
    %v716 = vld [vmem:[#allocation5 + $0x1a0] sm:$0xff]
    %v717 = vld [vmem:[#allocation5 + $0x1a8] sm:$0xff]
    %v718 = vld [vmem:[#allocation5 + $0x1b0] sm:$0xff]
    %v719 = vld [vmem:[#allocation5 + $0x1b8] sm:$0xff]
    %v720 = vld [vmem:[#allocation5 + $0x1c0] sm:$0xff]
    %v721 = vld [vmem:[#allocation5 + $0x1c8] sm:$0xff]
    %v722 = vld [vmem:[#allocation5 + $0x1d0] sm:$0xff]
    %v723 = vld [vmem:[#allocation5 + $0x1d8] sm:$0xff]
    %v724 = vld [vmem:[#allocation5 + $0x1e0] sm:$0xff]
    %v725 = vld [vmem:[#allocation5 + $0x1e8] sm:$0xff]
    %v726 = vld [vmem:[#allocation5 + $0x1f0] sm:$0xff]
    %v727 = vld [vmem:[#allocation5 + $0x1f8] sm:$0xff]
    %v728 = vld [vmem:[#allocation5 + $0x200] sm:$0xff]
    %v729 = vld [vmem:[#allocation5 + $0x208] sm:$0xff]
    %v730 = vld [vmem:[#allocation5 + $0x210] sm:$0xff]
    %v731 = vld [vmem:[#allocation5 + $0x218] sm:$0xff]
    %v732 = vld [vmem:[#allocation5 + $0x220] sm:$0xff]
    %v733 = vld [vmem:[#allocation5 + $0x228] sm:$0xff]
    %v734 = vld [vmem:[#allocation5 + $0x230] sm:$0xff]
    %v735 = vld [vmem:[#allocation5 + $0x238] sm:$0xff]
    %v736 = vld [vmem:[#allocation5 + $0x240] sm:$0xff]
    %v737 = vld [vmem:[#allocation5 + $0x248] sm:$0xff]
    %v738 = vld [vmem:[#allocation5 + $0x250] sm:$0xff]
    %v739 = vld [vmem:[#allocation5 + $0x258] sm:$0xff]
    %v740 = vld [vmem:[#allocation5 + $0x260] sm:$0xff]
    %v741 = vld [vmem:[#allocation5 + $0x268] sm:$0xff]
    %v742 = vld [vmem:[#allocation5 + $0x270] sm:$0xff]
    %v743 = vld [vmem:[#allocation5 + $0x278] sm:$0xff]
    %v744 = vld [vmem:[#allocation5 + $0x280] sm:$0xff]
    %v745 = vld [vmem:[#allocation5 + $0x288] sm:$0xff]
    %v746 = vld [vmem:[#allocation5 + $0x290] sm:$0xff]
    %v747 = vld [vmem:[#allocation5 + $0x298] sm:$0xff]
    %v748 = vld [vmem:[#allocation5 + $0x2a0] sm:$0xff]
    %v749 = vld [vmem:[#allocation5 + $0x2a8] sm:$0xff]
    %v750 = vld [vmem:[#allocation5 + $0x2b0] sm:$0xff]
    %v751 = vld [vmem:[#allocation5 + $0x2b8] sm:$0xff]
    %v752 = vld [vmem:[#allocation5 + $0x2c0] sm:$0xff]
    %v753 = vld [vmem:[#allocation5 + $0x2c8] sm:$0xff]
    %v754 = vld [vmem:[#allocation5 + $0x2d0] sm:$0xff]
    %v755 = vld [vmem:[#allocation5 + $0x2d8] sm:$0xff]
    %v756 = vld [vmem:[#allocation5 + $0x2e0] sm:$0xff]
    %v757 = vld [vmem:[#allocation5 + $0x2e8] sm:$0xff]
    %v758 = vld [vmem:[#allocation5 + $0x2f0] sm:$0xff]
    %v759 = vld [vmem:[#allocation5 + $0x2f8] sm:$0xff]
    %v760 = vld [vmem:[#allocation5 + $0x300] sm:$0xff]
    %v761 = vld [vmem:[#allocation5 + $0x308] sm:$0xff]
    %v762 = vld [vmem:[#allocation5 + $0x310] sm:$0xff]
    %v763 = vld [vmem:[#allocation5 + $0x318] sm:$0xff]
    %v764 = vld [vmem:[#allocation5 + $0x320] sm:$0xff]
    %v765 = vld [vmem:[#allocation5 + $0x328] sm:$0xff]
    %v766 = vld [vmem:[#allocation5 + $0x330] sm:$0xff]
    %v767 = vld [vmem:[#allocation5 + $0x338] sm:$0xff]
    %v768 = vld [vmem:[#allocation5 + $0x340] sm:$0xff]
    %v769 = vld [vmem:[#allocation5 + $0x348] sm:$0xff]
    %v770 = vld [vmem:[#allocation5 + $0x350] sm:$0xff]
    %v771 = vld [vmem:[#allocation5 + $0x358] sm:$0xff]
    %v772 = vld [vmem:[#allocation5 + $0x360] sm:$0xff]
    %v773 = vld [vmem:[#allocation5 + $0x368] sm:$0xff]
    %v774 = vld [vmem:[#allocation5 + $0x370] sm:$0xff]
    %v775 = vld [vmem:[#allocation5 + $0x378] sm:$0xff]
    %v776 = vld [vmem:[#allocation5 + $0x380] sm:$0xff]
    %v777 = vld [vmem:[#allocation5 + $0x388] sm:$0xff]
    %v778 = vld [vmem:[#allocation5 + $0x390] sm:$0xff]
    %v779 = vld [vmem:[#allocation5 + $0x398] sm:$0xff]
    %v780 = vld [vmem:[#allocation5 + $0x3a0] sm:$0xff]
    %v781 = vld [vmem:[#allocation5 + $0x3a8] sm:$0xff]
    %v782 = vld [vmem:[#allocation5 + $0x3b0] sm:$0xff]
    %v783 = vld [vmem:[#allocation5 + $0x3b8] sm:$0xff]
    %v784 = vld [vmem:[#allocation5 + $0x3c0] sm:$0xff]
    %v785 = vld [vmem:[#allocation5 + $0x3c8] sm:$0xff]
    %v786 = vld [vmem:[#allocation5 + $0x3d0] sm:$0xff]
    %v787 = vld [vmem:[#allocation5 + $0x3d8] sm:$0xff]
    %v788 = vld [vmem:[#allocation5 + $0x3e0] sm:$0xff]
    %v789 = vld [vmem:[#allocation5 + $0x3e8] sm:$0xff]
    %v790 = vld [vmem:[#allocation5 + $0x3f0] sm:$0xff]
    %v791 = vld [vmem:[#allocation5 + $0x3f8] sm:$0xff]
    %v792 = vld [vmem:[#allocation5 + $0x400] sm:$0xff]
    %v793 = vld [vmem:[#allocation5 + $0x408] sm:$0xff]
    %v794 = vld [vmem:[#allocation5 + $0x410] sm:$0xff]
    %v795 = vld [vmem:[#allocation5 + $0x418] sm:$0xff]
    %v796 = vld [vmem:[#allocation5 + $0x420] sm:$0xff]
    %v797 = vld [vmem:[#allocation5 + $0x428] sm:$0xff]
    %v798 = vld [vmem:[#allocation5 + $0x430] sm:$0xff]
    %v799 = vld [vmem:[#allocation5 + $0x438] sm:$0xff]
    %v800 = vld [vmem:[#allocation5 + $0x440] sm:$0xff]
    %v801 = vld [vmem:[#allocation5 + $0x448] sm:$0xff]
    %v802 = vld [vmem:[#allocation5 + $0x450] sm:$0xff]
    %v803 = vld [vmem:[#allocation5 + $0x458] sm:$0xff]
    %v804 = vld [vmem:[#allocation5 + $0x460] sm:$0xff]
    %v805 = vld [vmem:[#allocation5 + $0x468] sm:$0xff]
    %v806 = vld [vmem:[#allocation5 + $0x470] sm:$0xff]
    %v807 = vld [vmem:[#allocation5 + $0x478] sm:$0xff]
    %v808 = vld [vmem:[#allocation5 + $0x480] sm:$0xff]
    %v809 = vld [vmem:[#allocation5 + $0x488] sm:$0xff]
    %v810 = vld [vmem:[#allocation5 + $0x490] sm:$0xff]
    %v811 = vld [vmem:[#allocation5 + $0x498] sm:$0xff]
    %v812 = vld [vmem:[#allocation5 + $0x4a0] sm:$0xff]
    %v813 = vld [vmem:[#allocation5 + $0x4a8] sm:$0xff]
    %v814 = vld [vmem:[#allocation5 + $0x4b0] sm:$0xff]
    %v815 = vld [vmem:[#allocation5 + $0x4b8] sm:$0xff]
    %v816 = vld [vmem:[#allocation5 + $0x4c0] sm:$0xff]
    %v817 = vld [vmem:[#allocation5 + $0x4c8] sm:$0xff]
    %v818 = vld [vmem:[#allocation5 + $0x4d0] sm:$0xff]
    %v819 = vld [vmem:[#allocation5 + $0x4d8] sm:$0xff]
    %v820 = vld [vmem:[#allocation5 + $0x4e0] sm:$0xff]
    %v821 = vld [vmem:[#allocation5 + $0x4e8] sm:$0xff]
    %v822 = vld [vmem:[#allocation5 + $0x4f0] sm:$0xff]
    %v823 = vld [vmem:[#allocation5 + $0x4f8] sm:$0xff]
    %v824 = vld [vmem:[#allocation5 + $0x500] sm:$0xff]
    %v825 = vld [vmem:[#allocation5 + $0x508] sm:$0xff]
    %v826 = vld [vmem:[#allocation5 + $0x510] sm:$0xff]
    %v827 = vld [vmem:[#allocation5 + $0x518] sm:$0xff]
    %v828 = vld [vmem:[#allocation5 + $0x520] sm:$0xff]
    %v829 = vld [vmem:[#allocation5 + $0x528] sm:$0xff]
    %v830 = vld [vmem:[#allocation5 + $0x530] sm:$0xff]
    %v831 = vld [vmem:[#allocation5 + $0x538] sm:$0xff]
    %v832 = vld [vmem:[#allocation5 + $0x540] sm:$0xff]
    %v833 = vld [vmem:[#allocation5 + $0x548] sm:$0xff]
    %v834 = vld [vmem:[#allocation5 + $0x550] sm:$0xff]
    %v835 = vld [vmem:[#allocation5 + $0x558] sm:$0xff]
    %v836 = vld [vmem:[#allocation5 + $0x560] sm:$0xff]
    %v837 = vld [vmem:[#allocation5 + $0x568] sm:$0xff]
    %v838 = vld [vmem:[#allocation5 + $0x570] sm:$0xff]
    %v839 = vld [vmem:[#allocation5 + $0x578] sm:$0xff]
    %v840 = vld [vmem:[#allocation5 + $0x580] sm:$0xff]
    %v841 = vld [vmem:[#allocation5 + $0x588] sm:$0xff]
    %v842 = vld [vmem:[#allocation5 + $0x590] sm:$0xff]
    %v843 = vld [vmem:[#allocation5 + $0x598] sm:$0xff]
    %v844 = vld [vmem:[#allocation5 + $0x5a0] sm:$0xff]
    %v845 = vld [vmem:[#allocation5 + $0x5a8] sm:$0xff]
    %v846 = vld [vmem:[#allocation5 + $0x5b0] sm:$0xff]
    %v847 = vld [vmem:[#allocation5 + $0x5b8] sm:$0xff]
    %v848 = vld [vmem:[#allocation5 + $0x5c0] sm:$0xff]
    %v849 = vld [vmem:[#allocation5 + $0x5c8] sm:$0xff]
    %v850 = vld [vmem:[#allocation5 + $0x5d0] sm:$0xff]
    %v851 = vld [vmem:[#allocation5 + $0x5d8] sm:$0xff]
    %v852 = vld [vmem:[#allocation5 + $0x5e0] sm:$0xff]
    %v853 = vld [vmem:[#allocation5 + $0x5e8] sm:$0xff]
    %v854 = vld [vmem:[#allocation5 + $0x5f0] sm:$0xff]
    %v855 = vld [vmem:[#allocation5 + $0x5f8] sm:$0xff]
    %v856 = vld [vmem:[#allocation5 + $0x600] sm:$0xff]
    %v857 = vld [vmem:[#allocation5 + $0x608] sm:$0xff]
    %v858 = vld [vmem:[#allocation5 + $0x610] sm:$0xff]
    %v859 = vld [vmem:[#allocation5 + $0x618] sm:$0xff]
    %v860 = vld [vmem:[#allocation5 + $0x620] sm:$0xff]
    %v861 = vld [vmem:[#allocation5 + $0x628] sm:$0xff]
    %v862 = vld [vmem:[#allocation5 + $0x630] sm:$0xff]
    %v863 = vld [vmem:[#allocation5 + $0x638] sm:$0xff]
    %v864 = vld [vmem:[#allocation5 + $0x640] sm:$0xff]
    %v865 = vld [vmem:[#allocation5 + $0x648] sm:$0xff]
    %v866 = vld [vmem:[#allocation5 + $0x650] sm:$0xff]
    %v867 = vld [vmem:[#allocation5 + $0x658] sm:$0xff]
    %v868 = vld [vmem:[#allocation5 + $0x660] sm:$0xff]
    %v869 = vld [vmem:[#allocation5 + $0x668] sm:$0xff]
    %v870 = vld [vmem:[#allocation5 + $0x670] sm:$0xff]
    %v871 = vld [vmem:[#allocation5 + $0x678] sm:$0xff]
    %v872 = vld [vmem:[#allocation5 + $0x680] sm:$0xff]
    %v873 = vld [vmem:[#allocation5 + $0x688] sm:$0xff]
    %v874 = vld [vmem:[#allocation5 + $0x690] sm:$0xff]
    %v875 = vld [vmem:[#allocation5 + $0x698] sm:$0xff]
    %v876 = vld [vmem:[#allocation5 + $0x6a0] sm:$0xff]
    %v877 = vld [vmem:[#allocation5 + $0x6a8] sm:$0xff]
    %v878 = vld [vmem:[#allocation5 + $0x6b0] sm:$0xff]
    %v879 = vld [vmem:[#allocation5 + $0x6b8] sm:$0xff]
    %v880 = vld [vmem:[#allocation5 + $0x6c0] sm:$0xff]
    %v881 = vld [vmem:[#allocation5 + $0x6c8] sm:$0xff]
    %v882 = vld [vmem:[#allocation5 + $0x6d0] sm:$0xff]
    %v883 = vld [vmem:[#allocation5 + $0x6d8] sm:$0xff]
    %v884 = vld [vmem:[#allocation5 + $0x6e0] sm:$0xff]
    %v885 = vld [vmem:[#allocation5 + $0x6e8] sm:$0xff]
    %v886 = vld [vmem:[#allocation5 + $0x6f0] sm:$0xff]
    %v887 = vld [vmem:[#allocation5 + $0x6f8] sm:$0xff]
    %v888 = vld [vmem:[#allocation5 + $0x700] sm:$0xff]
    %v889 = vld [vmem:[#allocation5 + $0x708] sm:$0xff]
    %v890 = vld [vmem:[#allocation5 + $0x710] sm:$0xff]
    %v891 = vld [vmem:[#allocation5 + $0x718] sm:$0xff]
    %v892 = vld [vmem:[#allocation5 + $0x720] sm:$0xff]
    %v893 = vld [vmem:[#allocation5 + $0x728] sm:$0xff]
    %v894 = vld [vmem:[#allocation5 + $0x730] sm:$0xff]
    %v895 = vld [vmem:[#allocation5 + $0x738] sm:$0xff]
    %v896 = vld [vmem:[#allocation5 + $0x740] sm:$0xff]
    %v897 = vld [vmem:[#allocation5 + $0x748] sm:$0xff]
    %v898 = vld [vmem:[#allocation5 + $0x750] sm:$0xff]
    %v899 = vld [vmem:[#allocation5 + $0x758] sm:$0xff]
    %v900 = vld [vmem:[#allocation5 + $0x760] sm:$0xff]
    %v901 = vld [vmem:[#allocation5 + $0x768] sm:$0xff]
    %v902 = vld [vmem:[#allocation5 + $0x770] sm:$0xff]
    %v903 = vld [vmem:[#allocation5 + $0x778] sm:$0xff]
    %v904 = vld [vmem:[#allocation5 + $0x780] sm:$0xff]
    %v905 = vld [vmem:[#allocation5 + $0x788] sm:$0xff]
    %v906 = vld [vmem:[#allocation5 + $0x790] sm:$0xff]
    %v907 = vld [vmem:[#allocation5 + $0x798] sm:$0xff]
    %v908 = vld [vmem:[#allocation5 + $0x7a0] sm:$0xff]
    %v909 = vld [vmem:[#allocation5 + $0x7a8] sm:$0xff]
    %v910 = vld [vmem:[#allocation5 + $0x7b0] sm:$0xff]
    %v911 = vld [vmem:[#allocation5 + $0x7b8] sm:$0xff]
    %v912 = vld [vmem:[#allocation5 + $0x7c0] sm:$0xff]
    %v913 = vld [vmem:[#allocation5 + $0x7c8] sm:$0xff]
    %v914 = vld [vmem:[#allocation5 + $0x7d0] sm:$0xff]
    %v915 = vld [vmem:[#allocation5 + $0x7d8] sm:$0xff]
    %v916 = vld [vmem:[#allocation5 + $0x7e0] sm:$0xff]
    %v917 = vld [vmem:[#allocation5 + $0x7e8] sm:$0xff]
    %v918 = vld [vmem:[#allocation5 + $0x7f0] sm:$0xff]
    %v919 = vld [vmem:[#allocation5 + $0x7f8] sm:$0xff]
    %v920 = vld [vmem:[%s2] sm:$0x3]
    %v922 = vlaneseq
    %v923 = vshrl.u32 %v922, 7
    %v924 = vsub.s32 0, %v923
    %v925 = vrot.slane %v920, %v924
    %v926 = vlaneseq
    %v927 = vshrl.u32 %v926, 7
    %v928 = vsub.s32 1, %v927
    %v929 = vrot.slane %v920, %v928
    %v964 = vunpack.c.l.b16 %v632
    %v965 = vunpack.c.l.b16 %v633
    %v966 = vunpack.c.l.b16 %v634
    %v967 = vunpack.c.l.b16 %v635
    %v968 = vunpack.c.l.b16 %v636
    %v969 = vunpack.c.l.b16 %v637
    %v970 = vunpack.c.l.b16 %v638
    %v971 = vunpack.c.l.b16 %v639
    %v972 = vunpack.c.l.b16 %v640
    %v973 = vunpack.c.l.b16 %v641
    %v974 = vunpack.c.l.b16 %v642
    %v975 = vunpack.c.l.b16 %v643
    %v976 = vunpack.c.l.b16 %v644
    %v977 = vunpack.c.l.b16 %v645
    %v978 = vunpack.c.l.b16 %v646
    %v979 = vunpack.c.l.b16 %v647
    %v980 = vunpack.c.l.b16 %v648
    %v981 = vunpack.c.l.b16 %v649
    %v982 = vunpack.c.l.b16 %v650
    %v983 = vunpack.c.l.b16 %v651
    %v984 = vunpack.c.l.b16 %v652
    %v985 = vunpack.c.l.b16 %v653
    %v986 = vunpack.c.l.b16 %v654
    %v987 = vunpack.c.l.b16 %v655
    %v988 = vunpack.c.l.b16 %v656
    %v989 = vunpack.c.l.b16 %v657
    %v990 = vunpack.c.l.b16 %v658
    %v991 = vunpack.c.l.b16 %v659
    %v992 = vunpack.c.l.b16 %v660
    %v993 = vunpack.c.l.b16 %v661
    %v994 = vunpack.c.l.b16 %v662
    %v995 = vunpack.c.l.b16 %v663
    %v996 = vsel %vm595, %v980, %v964
    %v997 = vsel %vm595, %v981, %v965
    %v998 = vsel %vm595, %v982, %v966
    %v999 = vsel %vm595, %v983, %v967
    %v1000 = vsel %vm595, %v984, %v968
    %v1001 = vsel %vm595, %v985, %v969
    %v1002 = vsel %vm595, %v986, %v970
    %v1003 = vsel %vm595, %v987, %v971
    %v1004 = vsel %vm595, %v988, %v972
    %v1005 = vsel %vm595, %v989, %v973
    %v1006 = vsel %vm595, %v990, %v974
    %v1007 = vsel %vm595, %v991, %v975
    %v1008 = vsel %vm595, %v992, %v976
    %v1009 = vsel %vm595, %v993, %v977
    %v1010 = vsel %vm595, %v994, %v978
    %v1011 = vsel %vm595, %v995, %v979
    %v1012 = vpack.c.b16 %v996, %v996
    %v1013 = vpack.c.b16 %v997, %v997
    %v1014 = vpack.c.b16 %v998, %v998
    %v1015 = vpack.c.b16 %v999, %v999
    %v1016 = vpack.c.b16 %v1000, %v1000
    %v1017 = vpack.c.b16 %v1001, %v1001
    %v1018 = vpack.c.b16 %v1002, %v1002
    %v1019 = vpack.c.b16 %v1003, %v1003
    %v1020 = vpack.c.b16 %v1004, %v1004
    %v1021 = vpack.c.b16 %v1005, %v1005
    %v1022 = vpack.c.b16 %v1006, %v1006
    %v1023 = vpack.c.b16 %v1007, %v1007
    %v1024 = vpack.c.b16 %v1008, %v1008
    %v1025 = vpack.c.b16 %v1009, %v1009
    %v1026 = vpack.c.b16 %v1010, %v1010
    %v1027 = vpack.c.b16 %v1011, %v1011
    %v1300 = vunpack.c.l.b16 %v664
    %v1301 = vunpack.c.h.b16 %v664
    %v1302 = vunpack.c.l.b16 %v665
    %v1303 = vunpack.c.h.b16 %v665
    %v1304 = vunpack.c.l.b16 %v666
    %v1305 = vunpack.c.h.b16 %v666
    %v1306 = vunpack.c.l.b16 %v667
    %v1307 = vunpack.c.h.b16 %v667
    %v1308 = vunpack.c.l.b16 %v668
    %v1309 = vunpack.c.h.b16 %v668
    %v1310 = vunpack.c.l.b16 %v669
    %v1311 = vunpack.c.h.b16 %v669
    %v1312 = vunpack.c.l.b16 %v670
    %v1313 = vunpack.c.h.b16 %v670
    %v1314 = vunpack.c.l.b16 %v671
    %v1315 = vunpack.c.h.b16 %v671
    %v1316 = vunpack.c.l.b16 %v672
    %v1317 = vunpack.c.h.b16 %v672
    %v1318 = vunpack.c.l.b16 %v673
    %v1319 = vunpack.c.h.b16 %v673
    %v1320 = vunpack.c.l.b16 %v674
    %v1321 = vunpack.c.h.b16 %v674
    %v1322 = vunpack.c.l.b16 %v675
    %v1323 = vunpack.c.h.b16 %v675
    %v1324 = vunpack.c.l.b16 %v676
    %v1325 = vunpack.c.h.b16 %v676
    %v1326 = vunpack.c.l.b16 %v677
    %v1327 = vunpack.c.h.b16 %v677
    %v1328 = vunpack.c.l.b16 %v678
    %v1329 = vunpack.c.h.b16 %v678
    %v1330 = vunpack.c.l.b16 %v679
    %v1331 = vunpack.c.h.b16 %v679
    %v1332 = vunpack.c.l.b16 %v680
    %v1333 = vunpack.c.h.b16 %v680
    %v1334 = vunpack.c.l.b16 %v681
    %v1335 = vunpack.c.h.b16 %v681
    %v1336 = vunpack.c.l.b16 %v682
    %v1337 = vunpack.c.h.b16 %v682
    %v1338 = vunpack.c.l.b16 %v683
    %v1339 = vunpack.c.h.b16 %v683
    %v1340 = vunpack.c.l.b16 %v684
    %v1341 = vunpack.c.h.b16 %v684
    %v1342 = vunpack.c.l.b16 %v685
    %v1343 = vunpack.c.h.b16 %v685
    %v1344 = vunpack.c.l.b16 %v686
    %v1345 = vunpack.c.h.b16 %v686
    %v1346 = vunpack.c.l.b16 %v687
    %v1347 = vunpack.c.h.b16 %v687
    %v1348 = vunpack.c.l.b16 %v688
    %v1349 = vunpack.c.h.b16 %v688
    %v1350 = vunpack.c.l.b16 %v689
    %v1351 = vunpack.c.h.b16 %v689
    %v1352 = vunpack.c.l.b16 %v690
    %v1353 = vunpack.c.h.b16 %v690
    %v1354 = vunpack.c.l.b16 %v691
    %v1355 = vunpack.c.h.b16 %v691
    %v1356 = vunpack.c.l.b16 %v692
    %v1357 = vunpack.c.h.b16 %v692
    %v1358 = vunpack.c.l.b16 %v693
    %v1359 = vunpack.c.h.b16 %v693
    %v1360 = vunpack.c.l.b16 %v694
    %v1361 = vunpack.c.h.b16 %v694
    %v1362 = vunpack.c.l.b16 %v695
    %v1363 = vunpack.c.h.b16 %v695
    %v1364 = vunpack.c.l.b16 %v696
    %v1365 = vunpack.c.h.b16 %v696
    %v1366 = vunpack.c.l.b16 %v697
    %v1367 = vunpack.c.h.b16 %v697
    %v1368 = vunpack.c.l.b16 %v698
    %v1369 = vunpack.c.h.b16 %v698
    %v1370 = vunpack.c.l.b16 %v699
    %v1371 = vunpack.c.h.b16 %v699
    %v1372 = vunpack.c.l.b16 %v700
    %v1373 = vunpack.c.h.b16 %v700
    %v1374 = vunpack.c.l.b16 %v701
    %v1375 = vunpack.c.h.b16 %v701
    %v1376 = vunpack.c.l.b16 %v702
    %v1377 = vunpack.c.h.b16 %v702
    %v1378 = vunpack.c.l.b16 %v703
    %v1379 = vunpack.c.h.b16 %v703
    %v1380 = vunpack.c.l.b16 %v704
    %v1381 = vunpack.c.h.b16 %v704
    %v1382 = vunpack.c.l.b16 %v705
    %v1383 = vunpack.c.h.b16 %v705
    %v1384 = vunpack.c.l.b16 %v706
    %v1385 = vunpack.c.h.b16 %v706
    %v1386 = vunpack.c.l.b16 %v707
    %v1387 = vunpack.c.h.b16 %v707
    %v1388 = vunpack.c.l.b16 %v708
    %v1389 = vunpack.c.h.b16 %v708
    %v1390 = vunpack.c.l.b16 %v709
    %v1391 = vunpack.c.h.b16 %v709
    %v1392 = vunpack.c.l.b16 %v710
    %v1393 = vunpack.c.h.b16 %v710
    %v1394 = vunpack.c.l.b16 %v711
    %v1395 = vunpack.c.h.b16 %v711
    %v1396 = vunpack.c.l.b16 %v712
    %v1397 = vunpack.c.h.b16 %v712
    %v1398 = vunpack.c.l.b16 %v713
    %v1399 = vunpack.c.h.b16 %v713
    %v1400 = vunpack.c.l.b16 %v714
    %v1401 = vunpack.c.h.b16 %v714
    %v1402 = vunpack.c.l.b16 %v715
    %v1403 = vunpack.c.h.b16 %v715
    %v1404 = vunpack.c.l.b16 %v716
    %v1405 = vunpack.c.h.b16 %v716
    %v1406 = vunpack.c.l.b16 %v717
    %v1407 = vunpack.c.h.b16 %v717
    %v1408 = vunpack.c.l.b16 %v718
    %v1409 = vunpack.c.h.b16 %v718
    %v1410 = vunpack.c.l.b16 %v719
    %v1411 = vunpack.c.h.b16 %v719
    %v1412 = vunpack.c.l.b16 %v720
    %v1413 = vunpack.c.h.b16 %v720
    %v1414 = vunpack.c.l.b16 %v721
    %v1415 = vunpack.c.h.b16 %v721
    %v1416 = vunpack.c.l.b16 %v722
    %v1417 = vunpack.c.h.b16 %v722
    %v1418 = vunpack.c.l.b16 %v723
    %v1419 = vunpack.c.h.b16 %v723
    %v1420 = vunpack.c.l.b16 %v724
    %v1421 = vunpack.c.h.b16 %v724
    %v1422 = vunpack.c.l.b16 %v725
    %v1423 = vunpack.c.h.b16 %v725
    %v1424 = vunpack.c.l.b16 %v726
    %v1425 = vunpack.c.h.b16 %v726
    %v1426 = vunpack.c.l.b16 %v727
    %v1427 = vunpack.c.h.b16 %v727
    %v1428 = vunpack.c.l.b16 %v728
    %v1429 = vunpack.c.h.b16 %v728
    %v1430 = vunpack.c.l.b16 %v729
    %v1431 = vunpack.c.h.b16 %v729
    %v1432 = vunpack.c.l.b16 %v730
    %v1433 = vunpack.c.h.b16 %v730
    %v1434 = vunpack.c.l.b16 %v731
    %v1435 = vunpack.c.h.b16 %v731
    %v1436 = vunpack.c.l.b16 %v732
    %v1437 = vunpack.c.h.b16 %v732
    %v1438 = vunpack.c.l.b16 %v733
    %v1439 = vunpack.c.h.b16 %v733
    %v1440 = vunpack.c.l.b16 %v734
    %v1441 = vunpack.c.h.b16 %v734
    %v1442 = vunpack.c.l.b16 %v735
    %v1443 = vunpack.c.h.b16 %v735
    %v1444 = vunpack.c.l.b16 %v736
    %v1445 = vunpack.c.h.b16 %v736
    %v1446 = vunpack.c.l.b16 %v737
    %v1447 = vunpack.c.h.b16 %v737
    %v1448 = vunpack.c.l.b16 %v738
    %v1449 = vunpack.c.h.b16 %v738
    %v1450 = vunpack.c.l.b16 %v739
    %v1451 = vunpack.c.h.b16 %v739
    %v1452 = vunpack.c.l.b16 %v740
    %v1453 = vunpack.c.h.b16 %v740
    %v1454 = vunpack.c.l.b16 %v741
    %v1455 = vunpack.c.h.b16 %v741
    %v1456 = vunpack.c.l.b16 %v742
    %v1457 = vunpack.c.h.b16 %v742
    %v1458 = vunpack.c.l.b16 %v743
    %v1459 = vunpack.c.h.b16 %v743
    %v1460 = vunpack.c.l.b16 %v744
    %v1461 = vunpack.c.h.b16 %v744
    %v1462 = vunpack.c.l.b16 %v745
    %v1463 = vunpack.c.h.b16 %v745
    %v1464 = vunpack.c.l.b16 %v746
    %v1465 = vunpack.c.h.b16 %v746
    %v1466 = vunpack.c.l.b16 %v747
    %v1467 = vunpack.c.h.b16 %v747
    %v1468 = vunpack.c.l.b16 %v748
    %v1469 = vunpack.c.h.b16 %v748
    %v1470 = vunpack.c.l.b16 %v749
    %v1471 = vunpack.c.h.b16 %v749
    %v1472 = vunpack.c.l.b16 %v750
    %v1473 = vunpack.c.h.b16 %v750
    %v1474 = vunpack.c.l.b16 %v751
    %v1475 = vunpack.c.h.b16 %v751
    %v1476 = vunpack.c.l.b16 %v752
    %v1477 = vunpack.c.h.b16 %v752
    %v1478 = vunpack.c.l.b16 %v753
    %v1479 = vunpack.c.h.b16 %v753
    %v1480 = vunpack.c.l.b16 %v754
    %v1481 = vunpack.c.h.b16 %v754
    %v1482 = vunpack.c.l.b16 %v755
    %v1483 = vunpack.c.h.b16 %v755
    %v1484 = vunpack.c.l.b16 %v756
    %v1485 = vunpack.c.h.b16 %v756
    %v1486 = vunpack.c.l.b16 %v757
    %v1487 = vunpack.c.h.b16 %v757
    %v1488 = vunpack.c.l.b16 %v758
    %v1489 = vunpack.c.h.b16 %v758
    %v1490 = vunpack.c.l.b16 %v759
    %v1491 = vunpack.c.h.b16 %v759
    %v1492 = vunpack.c.l.b16 %v760
    %v1493 = vunpack.c.h.b16 %v760
    %v1494 = vunpack.c.l.b16 %v761
    %v1495 = vunpack.c.h.b16 %v761
    %v1496 = vunpack.c.l.b16 %v762
    %v1497 = vunpack.c.h.b16 %v762
    %v1498 = vunpack.c.l.b16 %v763
    %v1499 = vunpack.c.h.b16 %v763
    %v1500 = vunpack.c.l.b16 %v764
    %v1501 = vunpack.c.h.b16 %v764
    %v1502 = vunpack.c.l.b16 %v765
    %v1503 = vunpack.c.h.b16 %v765
    %v1504 = vunpack.c.l.b16 %v766
    %v1505 = vunpack.c.h.b16 %v766
    %v1506 = vunpack.c.l.b16 %v767
    %v1507 = vunpack.c.h.b16 %v767
    %v1508 = vunpack.c.l.b16 %v768
    %v1509 = vunpack.c.h.b16 %v768
    %v1510 = vunpack.c.l.b16 %v769
    %v1511 = vunpack.c.h.b16 %v769
    %v1512 = vunpack.c.l.b16 %v770
    %v1513 = vunpack.c.h.b16 %v770
    %v1514 = vunpack.c.l.b16 %v771
    %v1515 = vunpack.c.h.b16 %v771
    %v1516 = vunpack.c.l.b16 %v772
    %v1517 = vunpack.c.h.b16 %v772
    %v1518 = vunpack.c.l.b16 %v773
    %v1519 = vunpack.c.h.b16 %v773
    %v1520 = vunpack.c.l.b16 %v774
    %v1521 = vunpack.c.h.b16 %v774
    %v1522 = vunpack.c.l.b16 %v775
    %v1523 = vunpack.c.h.b16 %v775
    %v1524 = vunpack.c.l.b16 %v776
    %v1525 = vunpack.c.h.b16 %v776
    %v1526 = vunpack.c.l.b16 %v777
    %v1527 = vunpack.c.h.b16 %v777
    %v1528 = vunpack.c.l.b16 %v778
    %v1529 = vunpack.c.h.b16 %v778
    %v1530 = vunpack.c.l.b16 %v779
    %v1531 = vunpack.c.h.b16 %v779
    %v1532 = vunpack.c.l.b16 %v780
    %v1533 = vunpack.c.h.b16 %v780
    %v1534 = vunpack.c.l.b16 %v781
    %v1535 = vunpack.c.h.b16 %v781
    %v1536 = vunpack.c.l.b16 %v782
    %v1537 = vunpack.c.h.b16 %v782
    %v1538 = vunpack.c.l.b16 %v783
    %v1539 = vunpack.c.h.b16 %v783
    %v1540 = vunpack.c.l.b16 %v784
    %v1541 = vunpack.c.h.b16 %v784
    %v1542 = vunpack.c.l.b16 %v785
    %v1543 = vunpack.c.h.b16 %v785
    %v1544 = vunpack.c.l.b16 %v786
    %v1545 = vunpack.c.h.b16 %v786
    %v1546 = vunpack.c.l.b16 %v787
    %v1547 = vunpack.c.h.b16 %v787
    %v1548 = vunpack.c.l.b16 %v788
    %v1549 = vunpack.c.h.b16 %v788
    %v1550 = vunpack.c.l.b16 %v789
    %v1551 = vunpack.c.h.b16 %v789
    %v1552 = vunpack.c.l.b16 %v790
    %v1553 = vunpack.c.h.b16 %v790
    %v1554 = vunpack.c.l.b16 %v791
    %v1555 = vunpack.c.h.b16 %v791
    %v1556 = vunpack.c.l.b16 %v792
    %v1557 = vunpack.c.h.b16 %v792
    %v1558 = vunpack.c.l.b16 %v793
    %v1559 = vunpack.c.h.b16 %v793
    %v1560 = vunpack.c.l.b16 %v794
    %v1561 = vunpack.c.h.b16 %v794
    %v1562 = vunpack.c.l.b16 %v795
    %v1563 = vunpack.c.h.b16 %v795
    %v1564 = vunpack.c.l.b16 %v796
    %v1565 = vunpack.c.h.b16 %v796
    %v1566 = vunpack.c.l.b16 %v797
    %v1567 = vunpack.c.h.b16 %v797
    %v1568 = vunpack.c.l.b16 %v798
    %v1569 = vunpack.c.h.b16 %v798
    %v1570 = vunpack.c.l.b16 %v799
    %v1571 = vunpack.c.h.b16 %v799
    %v1572 = vunpack.c.l.b16 %v800
    %v1573 = vunpack.c.h.b16 %v800
    %v1574 = vunpack.c.l.b16 %v801
    %v1575 = vunpack.c.h.b16 %v801
    %v1576 = vunpack.c.l.b16 %v802
    %v1577 = vunpack.c.h.b16 %v802
    %v1578 = vunpack.c.l.b16 %v803
    %v1579 = vunpack.c.h.b16 %v803
    %v1580 = vunpack.c.l.b16 %v804
    %v1581 = vunpack.c.h.b16 %v804
    %v1582 = vunpack.c.l.b16 %v805
    %v1583 = vunpack.c.h.b16 %v805
    %v1584 = vunpack.c.l.b16 %v806
    %v1585 = vunpack.c.h.b16 %v806
    %v1586 = vunpack.c.l.b16 %v807
    %v1587 = vunpack.c.h.b16 %v807
    %v1588 = vunpack.c.l.b16 %v808
    %v1589 = vunpack.c.h.b16 %v808
    %v1590 = vunpack.c.l.b16 %v809
    %v1591 = vunpack.c.h.b16 %v809
    %v1592 = vunpack.c.l.b16 %v810
    %v1593 = vunpack.c.h.b16 %v810
    %v1594 = vunpack.c.l.b16 %v811
    %v1595 = vunpack.c.h.b16 %v811
    %v1596 = vunpack.c.l.b16 %v812
    %v1597 = vunpack.c.h.b16 %v812
    %v1598 = vunpack.c.l.b16 %v813
    %v1599 = vunpack.c.h.b16 %v813
    %v1600 = vunpack.c.l.b16 %v814
    %v1601 = vunpack.c.h.b16 %v814
    %v1602 = vunpack.c.l.b16 %v815
    %v1603 = vunpack.c.h.b16 %v815
    %v1604 = vunpack.c.l.b16 %v816
    %v1605 = vunpack.c.h.b16 %v816
    %v1606 = vunpack.c.l.b16 %v817
    %v1607 = vunpack.c.h.b16 %v817
    %v1608 = vunpack.c.l.b16 %v818
    %v1609 = vunpack.c.h.b16 %v818
    %v1610 = vunpack.c.l.b16 %v819
    %v1611 = vunpack.c.h.b16 %v819
    %v1612 = vunpack.c.l.b16 %v820
    %v1613 = vunpack.c.h.b16 %v820
    %v1614 = vunpack.c.l.b16 %v821
    %v1615 = vunpack.c.h.b16 %v821
    %v1616 = vunpack.c.l.b16 %v822
    %v1617 = vunpack.c.h.b16 %v822
    %v1618 = vunpack.c.l.b16 %v823
    %v1619 = vunpack.c.h.b16 %v823
    %v1620 = vunpack.c.l.b16 %v824
    %v1621 = vunpack.c.h.b16 %v824
    %v1622 = vunpack.c.l.b16 %v825
    %v1623 = vunpack.c.h.b16 %v825
    %v1624 = vunpack.c.l.b16 %v826
    %v1625 = vunpack.c.h.b16 %v826
    %v1626 = vunpack.c.l.b16 %v827
    %v1627 = vunpack.c.h.b16 %v827
    %v1628 = vunpack.c.l.b16 %v828
    %v1629 = vunpack.c.h.b16 %v828
    %v1630 = vunpack.c.l.b16 %v829
    %v1631 = vunpack.c.h.b16 %v829
    %v1632 = vunpack.c.l.b16 %v830
    %v1633 = vunpack.c.h.b16 %v830
    %v1634 = vunpack.c.l.b16 %v831
    %v1635 = vunpack.c.h.b16 %v831
    %v1636 = vunpack.c.l.b16 %v832
    %v1637 = vunpack.c.h.b16 %v832
    %v1638 = vunpack.c.l.b16 %v833
    %v1639 = vunpack.c.h.b16 %v833
    %v1640 = vunpack.c.l.b16 %v834
    %v1641 = vunpack.c.h.b16 %v834
    %v1642 = vunpack.c.l.b16 %v835
    %v1643 = vunpack.c.h.b16 %v835
    %v1644 = vunpack.c.l.b16 %v836
    %v1645 = vunpack.c.h.b16 %v836
    %v1646 = vunpack.c.l.b16 %v837
    %v1647 = vunpack.c.h.b16 %v837
    %v1648 = vunpack.c.l.b16 %v838
    %v1649 = vunpack.c.h.b16 %v838
    %v1650 = vunpack.c.l.b16 %v839
    %v1651 = vunpack.c.h.b16 %v839
    %v1652 = vunpack.c.l.b16 %v840
    %v1653 = vunpack.c.h.b16 %v840
    %v1654 = vunpack.c.l.b16 %v841
    %v1655 = vunpack.c.h.b16 %v841
    %v1656 = vunpack.c.l.b16 %v842
    %v1657 = vunpack.c.h.b16 %v842
    %v1658 = vunpack.c.l.b16 %v843
    %v1659 = vunpack.c.h.b16 %v843
    %v1660 = vunpack.c.l.b16 %v844
    %v1661 = vunpack.c.h.b16 %v844
    %v1662 = vunpack.c.l.b16 %v845
    %v1663 = vunpack.c.h.b16 %v845
    %v1664 = vunpack.c.l.b16 %v846
    %v1665 = vunpack.c.h.b16 %v846
    %v1666 = vunpack.c.l.b16 %v847
    %v1667 = vunpack.c.h.b16 %v847
    %v1668 = vunpack.c.l.b16 %v848
    %v1669 = vunpack.c.h.b16 %v848
    %v1670 = vunpack.c.l.b16 %v849
    %v1671 = vunpack.c.h.b16 %v849
    %v1672 = vunpack.c.l.b16 %v850
    %v1673 = vunpack.c.h.b16 %v850
    %v1674 = vunpack.c.l.b16 %v851
    %v1675 = vunpack.c.h.b16 %v851
    %v1676 = vunpack.c.l.b16 %v852
    %v1677 = vunpack.c.h.b16 %v852
    %v1678 = vunpack.c.l.b16 %v853
    %v1679 = vunpack.c.h.b16 %v853
    %v1680 = vunpack.c.l.b16 %v854
    %v1681 = vunpack.c.h.b16 %v854
    %v1682 = vunpack.c.l.b16 %v855
    %v1683 = vunpack.c.h.b16 %v855
    %v1684 = vunpack.c.l.b16 %v856
    %v1685 = vunpack.c.h.b16 %v856
    %v1686 = vunpack.c.l.b16 %v857
    %v1687 = vunpack.c.h.b16 %v857
    %v1688 = vunpack.c.l.b16 %v858
    %v1689 = vunpack.c.h.b16 %v858
    %v1690 = vunpack.c.l.b16 %v859
    %v1691 = vunpack.c.h.b16 %v859
    %v1692 = vunpack.c.l.b16 %v860
    %v1693 = vunpack.c.h.b16 %v860
    %v1694 = vunpack.c.l.b16 %v861
    %v1695 = vunpack.c.h.b16 %v861
    %v1696 = vunpack.c.l.b16 %v862
    %v1697 = vunpack.c.h.b16 %v862
    %v1698 = vunpack.c.l.b16 %v863
    %v1699 = vunpack.c.h.b16 %v863
    %v1700 = vunpack.c.l.b16 %v864
    %v1701 = vunpack.c.h.b16 %v864
    %v1702 = vunpack.c.l.b16 %v865
    %v1703 = vunpack.c.h.b16 %v865
    %v1704 = vunpack.c.l.b16 %v866
    %v1705 = vunpack.c.h.b16 %v866
    %v1706 = vunpack.c.l.b16 %v867
    %v1707 = vunpack.c.h.b16 %v867
    %v1708 = vunpack.c.l.b16 %v868
    %v1709 = vunpack.c.h.b16 %v868
    %v1710 = vunpack.c.l.b16 %v869
    %v1711 = vunpack.c.h.b16 %v869
    %v1712 = vunpack.c.l.b16 %v870
    %v1713 = vunpack.c.h.b16 %v870
    %v1714 = vunpack.c.l.b16 %v871
    %v1715 = vunpack.c.h.b16 %v871
    %v1716 = vunpack.c.l.b16 %v872
    %v1717 = vunpack.c.h.b16 %v872
    %v1718 = vunpack.c.l.b16 %v873
    %v1719 = vunpack.c.h.b16 %v873
    %v1720 = vunpack.c.l.b16 %v874
    %v1721 = vunpack.c.h.b16 %v874
    %v1722 = vunpack.c.l.b16 %v875
    %v1723 = vunpack.c.h.b16 %v875
    %v1724 = vunpack.c.l.b16 %v876
    %v1725 = vunpack.c.h.b16 %v876
    %v1726 = vunpack.c.l.b16 %v877
    %v1727 = vunpack.c.h.b16 %v877
    %v1728 = vunpack.c.l.b16 %v878
    %v1729 = vunpack.c.h.b16 %v878
    %v1730 = vunpack.c.l.b16 %v879
    %v1731 = vunpack.c.h.b16 %v879
    %v1732 = vunpack.c.l.b16 %v880
    %v1733 = vunpack.c.h.b16 %v880
    %v1734 = vunpack.c.l.b16 %v881
    %v1735 = vunpack.c.h.b16 %v881
    %v1736 = vunpack.c.l.b16 %v882
    %v1737 = vunpack.c.h.b16 %v882
    %v1738 = vunpack.c.l.b16 %v883
    %v1739 = vunpack.c.h.b16 %v883
    %v1740 = vunpack.c.l.b16 %v884
    %v1741 = vunpack.c.h.b16 %v884
    %v1742 = vunpack.c.l.b16 %v885
    %v1743 = vunpack.c.h.b16 %v885
    %v1744 = vunpack.c.l.b16 %v886
    %v1745 = vunpack.c.h.b16 %v886
    %v1746 = vunpack.c.l.b16 %v887
    %v1747 = vunpack.c.h.b16 %v887
    %v1748 = vunpack.c.l.b16 %v888
    %v1749 = vunpack.c.h.b16 %v888
    %v1750 = vunpack.c.l.b16 %v889
    %v1751 = vunpack.c.h.b16 %v889
    %v1752 = vunpack.c.l.b16 %v890
    %v1753 = vunpack.c.h.b16 %v890
    %v1754 = vunpack.c.l.b16 %v891
    %v1755 = vunpack.c.h.b16 %v891
    %v1756 = vunpack.c.l.b16 %v892
    %v1757 = vunpack.c.h.b16 %v892
    %v1758 = vunpack.c.l.b16 %v893
    %v1759 = vunpack.c.h.b16 %v893
    %v1760 = vunpack.c.l.b16 %v894
    %v1761 = vunpack.c.h.b16 %v894
    %v1762 = vunpack.c.l.b16 %v895
    %v1763 = vunpack.c.h.b16 %v895
    %v1764 = vunpack.c.l.b16 %v896
    %v1765 = vunpack.c.h.b16 %v896
    %v1766 = vunpack.c.l.b16 %v897
    %v1767 = vunpack.c.h.b16 %v897
    %v1768 = vunpack.c.l.b16 %v898
    %v1769 = vunpack.c.h.b16 %v898
    %v1770 = vunpack.c.l.b16 %v899
    %v1771 = vunpack.c.h.b16 %v899
    %v1772 = vunpack.c.l.b16 %v900
    %v1773 = vunpack.c.h.b16 %v900
    %v1774 = vunpack.c.l.b16 %v901
    %v1775 = vunpack.c.h.b16 %v901
    %v1776 = vunpack.c.l.b16 %v902
    %v1777 = vunpack.c.h.b16 %v902
    %v1778 = vunpack.c.l.b16 %v903
    %v1779 = vunpack.c.h.b16 %v903
    %v1780 = vunpack.c.l.b16 %v904
    %v1781 = vunpack.c.h.b16 %v904
    %v1782 = vunpack.c.l.b16 %v905
    %v1783 = vunpack.c.h.b16 %v905
    %v1784 = vunpack.c.l.b16 %v906
    %v1785 = vunpack.c.h.b16 %v906
    %v1786 = vunpack.c.l.b16 %v907
    %v1787 = vunpack.c.h.b16 %v907
    %v1788 = vunpack.c.l.b16 %v908
    %v1789 = vunpack.c.h.b16 %v908
    %v1790 = vunpack.c.l.b16 %v909
    %v1791 = vunpack.c.h.b16 %v909
    %v1792 = vunpack.c.l.b16 %v910
    %v1793 = vunpack.c.h.b16 %v910
    %v1794 = vunpack.c.l.b16 %v911
    %v1795 = vunpack.c.h.b16 %v911
    %v1796 = vunpack.c.l.b16 %v912
    %v1797 = vunpack.c.h.b16 %v912
    %v1798 = vunpack.c.l.b16 %v913
    %v1799 = vunpack.c.h.b16 %v913
    %v1800 = vunpack.c.l.b16 %v914
    %v1801 = vunpack.c.h.b16 %v914
    %v1802 = vunpack.c.l.b16 %v915
    %v1803 = vunpack.c.h.b16 %v915
    %v1804 = vunpack.c.l.b16 %v916
    %v1805 = vunpack.c.h.b16 %v916
    %v1806 = vunpack.c.l.b16 %v917
    %v1807 = vunpack.c.h.b16 %v917
    %v1808 = vunpack.c.l.b16 %v918
    %v1809 = vunpack.c.h.b16 %v918
    %v1810 = vunpack.c.l.b16 %v919
    %v1811 = vunpack.c.h.b16 %v919
    %v1812 = vpack.c.b16 %v1302, %v1300
    %v1813 = vpack.c.b16 %v1303, %v1301
    %v1814 = vpack.c.b16 %v1306, %v1304
    %v1815 = vpack.c.b16 %v1307, %v1305
    %v1816 = vpack.c.b16 %v1310, %v1308
    %v1817 = vpack.c.b16 %v1311, %v1309
    %v1818 = vpack.c.b16 %v1314, %v1312
    %v1819 = vpack.c.b16 %v1315, %v1313
    %v1820 = vpack.c.b16 %v1318, %v1316
    %v1821 = vpack.c.b16 %v1319, %v1317
    %v1822 = vpack.c.b16 %v1322, %v1320
    %v1823 = vpack.c.b16 %v1323, %v1321
    %v1824 = vpack.c.b16 %v1326, %v1324
    %v1825 = vpack.c.b16 %v1327, %v1325
    %v1826 = vpack.c.b16 %v1330, %v1328
    %v1827 = vpack.c.b16 %v1331, %v1329
    %v1828 = vpack.c.b16 %v1334, %v1332
    %v1829 = vpack.c.b16 %v1335, %v1333
    %v1830 = vpack.c.b16 %v1338, %v1336
    %v1831 = vpack.c.b16 %v1339, %v1337
    %v1832 = vpack.c.b16 %v1342, %v1340
    %v1833 = vpack.c.b16 %v1343, %v1341
    %v1834 = vpack.c.b16 %v1346, %v1344
    %v1835 = vpack.c.b16 %v1347, %v1345
    %v1836 = vpack.c.b16 %v1350, %v1348
    %v1837 = vpack.c.b16 %v1351, %v1349
    %v1838 = vpack.c.b16 %v1354, %v1352
    %v1839 = vpack.c.b16 %v1355, %v1353
    %v1840 = vpack.c.b16 %v1358, %v1356
    %v1841 = vpack.c.b16 %v1359, %v1357
    %v1842 = vpack.c.b16 %v1362, %v1360
    %v1843 = vpack.c.b16 %v1363, %v1361
    %v1844 = vpack.c.b16 %v1366, %v1364
    %v1845 = vpack.c.b16 %v1367, %v1365
    %v1846 = vpack.c.b16 %v1370, %v1368
    %v1847 = vpack.c.b16 %v1371, %v1369
    %v1848 = vpack.c.b16 %v1374, %v1372
    %v1849 = vpack.c.b16 %v1375, %v1373
    %v1850 = vpack.c.b16 %v1378, %v1376
    %v1851 = vpack.c.b16 %v1379, %v1377
    %v1852 = vpack.c.b16 %v1382, %v1380
    %v1853 = vpack.c.b16 %v1383, %v1381
    %v1854 = vpack.c.b16 %v1386, %v1384
    %v1855 = vpack.c.b16 %v1387, %v1385
    %v1856 = vpack.c.b16 %v1390, %v1388
    %v1857 = vpack.c.b16 %v1391, %v1389
    %v1858 = vpack.c.b16 %v1394, %v1392
    %v1859 = vpack.c.b16 %v1395, %v1393
    %v1860 = vpack.c.b16 %v1398, %v1396
    %v1861 = vpack.c.b16 %v1399, %v1397
    %v1862 = vpack.c.b16 %v1402, %v1400
    %v1863 = vpack.c.b16 %v1403, %v1401
    %v1864 = vpack.c.b16 %v1406, %v1404
    %v1865 = vpack.c.b16 %v1407, %v1405
    %v1866 = vpack.c.b16 %v1410, %v1408
    %v1867 = vpack.c.b16 %v1411, %v1409
    %v1868 = vpack.c.b16 %v1414, %v1412
    %v1869 = vpack.c.b16 %v1415, %v1413
    %v1870 = vpack.c.b16 %v1418, %v1416
    %v1871 = vpack.c.b16 %v1419, %v1417
    %v1872 = vpack.c.b16 %v1422, %v1420
    %v1873 = vpack.c.b16 %v1423, %v1421
    %v1874 = vpack.c.b16 %v1426, %v1424
    %v1875 = vpack.c.b16 %v1427, %v1425
    %v1876 = vpack.c.b16 %v1430, %v1428
    %v1877 = vpack.c.b16 %v1431, %v1429
    %v1878 = vpack.c.b16 %v1434, %v1432
    %v1879 = vpack.c.b16 %v1435, %v1433
    %v1880 = vpack.c.b16 %v1438, %v1436
    %v1881 = vpack.c.b16 %v1439, %v1437
    %v1882 = vpack.c.b16 %v1442, %v1440
    %v1883 = vpack.c.b16 %v1443, %v1441
    %v1884 = vpack.c.b16 %v1446, %v1444
    %v1885 = vpack.c.b16 %v1447, %v1445
    %v1886 = vpack.c.b16 %v1450, %v1448
    %v1887 = vpack.c.b16 %v1451, %v1449
    %v1888 = vpack.c.b16 %v1454, %v1452
    %v1889 = vpack.c.b16 %v1455, %v1453
    %v1890 = vpack.c.b16 %v1458, %v1456
    %v1891 = vpack.c.b16 %v1459, %v1457
    %v1892 = vpack.c.b16 %v1462, %v1460
    %v1893 = vpack.c.b16 %v1463, %v1461
    %v1894 = vpack.c.b16 %v1466, %v1464
    %v1895 = vpack.c.b16 %v1467, %v1465
    %v1896 = vpack.c.b16 %v1470, %v1468
    %v1897 = vpack.c.b16 %v1471, %v1469
    %v1898 = vpack.c.b16 %v1474, %v1472
    %v1899 = vpack.c.b16 %v1475, %v1473
    %v1900 = vpack.c.b16 %v1478, %v1476
    %v1901 = vpack.c.b16 %v1479, %v1477
    %v1902 = vpack.c.b16 %v1482, %v1480
    %v1903 = vpack.c.b16 %v1483, %v1481
    %v1904 = vpack.c.b16 %v1486, %v1484
    %v1905 = vpack.c.b16 %v1487, %v1485
    %v1906 = vpack.c.b16 %v1490, %v1488
    %v1907 = vpack.c.b16 %v1491, %v1489
    %v1908 = vpack.c.b16 %v1494, %v1492
    %v1909 = vpack.c.b16 %v1495, %v1493
    %v1910 = vpack.c.b16 %v1498, %v1496
    %v1911 = vpack.c.b16 %v1499, %v1497
    %v1912 = vpack.c.b16 %v1502, %v1500
    %v1913 = vpack.c.b16 %v1503, %v1501
    %v1914 = vpack.c.b16 %v1506, %v1504
    %v1915 = vpack.c.b16 %v1507, %v1505
    %v1916 = vpack.c.b16 %v1510, %v1508
    %v1917 = vpack.c.b16 %v1511, %v1509
    %v1918 = vpack.c.b16 %v1514, %v1512
    %v1919 = vpack.c.b16 %v1515, %v1513
    %v1920 = vpack.c.b16 %v1518, %v1516
    %v1921 = vpack.c.b16 %v1519, %v1517
    %v1922 = vpack.c.b16 %v1522, %v1520
    %v1923 = vpack.c.b16 %v1523, %v1521
    %v1924 = vpack.c.b16 %v1526, %v1524
    %v1925 = vpack.c.b16 %v1527, %v1525
    %v1926 = vpack.c.b16 %v1530, %v1528
    %v1927 = vpack.c.b16 %v1531, %v1529
    %v1928 = vpack.c.b16 %v1534, %v1532
    %v1929 = vpack.c.b16 %v1535, %v1533
    %v1930 = vpack.c.b16 %v1538, %v1536
    %v1931 = vpack.c.b16 %v1539, %v1537
    %v1932 = vpack.c.b16 %v1542, %v1540
    %v1933 = vpack.c.b16 %v1543, %v1541
    %v1934 = vpack.c.b16 %v1546, %v1544
    %v1935 = vpack.c.b16 %v1547, %v1545
    %v1936 = vpack.c.b16 %v1550, %v1548
    %v1937 = vpack.c.b16 %v1551, %v1549
    %v1938 = vpack.c.b16 %v1554, %v1552
    %v1939 = vpack.c.b16 %v1555, %v1553
    %v1940 = vpack.c.b16 %v1558, %v1556
    %v1941 = vpack.c.b16 %v1559, %v1557
    %v1942 = vpack.c.b16 %v1562, %v1560
    %v1943 = vpack.c.b16 %v1563, %v1561
    %v1944 = vpack.c.b16 %v1566, %v1564
    %v1945 = vpack.c.b16 %v1567, %v1565
    %v1946 = vpack.c.b16 %v1570, %v1568
    %v1947 = vpack.c.b16 %v1571, %v1569
    %v1948 = vpack.c.b16 %v1574, %v1572
    %v1949 = vpack.c.b16 %v1575, %v1573
    %v1950 = vpack.c.b16 %v1578, %v1576
    %v1951 = vpack.c.b16 %v1579, %v1577
    %v1952 = vpack.c.b16 %v1582, %v1580
    %v1953 = vpack.c.b16 %v1583, %v1581
    %v1954 = vpack.c.b16 %v1586, %v1584
    %v1955 = vpack.c.b16 %v1587, %v1585
    %v1956 = vpack.c.b16 %v1590, %v1588
    %v1957 = vpack.c.b16 %v1591, %v1589
    %v1958 = vpack.c.b16 %v1594, %v1592
    %v1959 = vpack.c.b16 %v1595, %v1593
    %v1960 = vpack.c.b16 %v1598, %v1596
    %v1961 = vpack.c.b16 %v1599, %v1597
    %v1962 = vpack.c.b16 %v1602, %v1600
    %v1963 = vpack.c.b16 %v1603, %v1601
    %v1964 = vpack.c.b16 %v1606, %v1604
    %v1965 = vpack.c.b16 %v1607, %v1605
    %v1966 = vpack.c.b16 %v1610, %v1608
    %v1967 = vpack.c.b16 %v1611, %v1609
    %v1968 = vpack.c.b16 %v1614, %v1612
    %v1969 = vpack.c.b16 %v1615, %v1613
    %v1970 = vpack.c.b16 %v1618, %v1616
    %v1971 = vpack.c.b16 %v1619, %v1617
    %v1972 = vpack.c.b16 %v1622, %v1620
    %v1973 = vpack.c.b16 %v1623, %v1621
    %v1974 = vpack.c.b16 %v1626, %v1624
    %v1975 = vpack.c.b16 %v1627, %v1625
    %v1976 = vpack.c.b16 %v1630, %v1628
    %v1977 = vpack.c.b16 %v1631, %v1629
    %v1978 = vpack.c.b16 %v1634, %v1632
    %v1979 = vpack.c.b16 %v1635, %v1633
    %v1980 = vpack.c.b16 %v1638, %v1636
    %v1981 = vpack.c.b16 %v1639, %v1637
    %v1982 = vpack.c.b16 %v1642, %v1640
    %v1983 = vpack.c.b16 %v1643, %v1641
    %v1984 = vpack.c.b16 %v1646, %v1644
    %v1985 = vpack.c.b16 %v1647, %v1645
    %v1986 = vpack.c.b16 %v1650, %v1648
    %v1987 = vpack.c.b16 %v1651, %v1649
    %v1988 = vpack.c.b16 %v1654, %v1652
    %v1989 = vpack.c.b16 %v1655, %v1653
    %v1990 = vpack.c.b16 %v1658, %v1656
    %v1991 = vpack.c.b16 %v1659, %v1657
    %v1992 = vpack.c.b16 %v1662, %v1660
    %v1993 = vpack.c.b16 %v1663, %v1661
    %v1994 = vpack.c.b16 %v1666, %v1664
    %v1995 = vpack.c.b16 %v1667, %v1665
    %v1996 = vpack.c.b16 %v1670, %v1668
    %v1997 = vpack.c.b16 %v1671, %v1669
    %v1998 = vpack.c.b16 %v1674, %v1672
    %v1999 = vpack.c.b16 %v1675, %v1673
    %v2000 = vpack.c.b16 %v1678, %v1676
    %v2001 = vpack.c.b16 %v1679, %v1677
    %v2002 = vpack.c.b16 %v1682, %v1680
    %v2003 = vpack.c.b16 %v1683, %v1681
    %v2004 = vpack.c.b16 %v1686, %v1684
    %v2005 = vpack.c.b16 %v1687, %v1685
    %v2006 = vpack.c.b16 %v1690, %v1688
    %v2007 = vpack.c.b16 %v1691, %v1689
    %v2008 = vpack.c.b16 %v1694, %v1692
    %v2009 = vpack.c.b16 %v1695, %v1693
    %v2010 = vpack.c.b16 %v1698, %v1696
    %v2011 = vpack.c.b16 %v1699, %v1697
    %v2012 = vpack.c.b16 %v1702, %v1700
    %v2013 = vpack.c.b16 %v1703, %v1701
    %v2014 = vpack.c.b16 %v1706, %v1704
    %v2015 = vpack.c.b16 %v1707, %v1705
    %v2016 = vpack.c.b16 %v1710, %v1708
    %v2017 = vpack.c.b16 %v1711, %v1709
    %v2018 = vpack.c.b16 %v1714, %v1712
    %v2019 = vpack.c.b16 %v1715, %v1713
    %v2020 = vpack.c.b16 %v1718, %v1716
    %v2021 = vpack.c.b16 %v1719, %v1717
    %v2022 = vpack.c.b16 %v1722, %v1720
    %v2023 = vpack.c.b16 %v1723, %v1721
    %v2024 = vpack.c.b16 %v1726, %v1724
    %v2025 = vpack.c.b16 %v1727, %v1725
    %v2026 = vpack.c.b16 %v1730, %v1728
    %v2027 = vpack.c.b16 %v1731, %v1729
    %v2028 = vpack.c.b16 %v1734, %v1732
    %v2029 = vpack.c.b16 %v1735, %v1733
    %v2030 = vpack.c.b16 %v1738, %v1736
    %v2031 = vpack.c.b16 %v1739, %v1737
    %v2032 = vpack.c.b16 %v1742, %v1740
    %v2033 = vpack.c.b16 %v1743, %v1741
    %v2034 = vpack.c.b16 %v1746, %v1744
    %v2035 = vpack.c.b16 %v1747, %v1745
    %v2036 = vpack.c.b16 %v1750, %v1748
    %v2037 = vpack.c.b16 %v1751, %v1749
    %v2038 = vpack.c.b16 %v1754, %v1752
    %v2039 = vpack.c.b16 %v1755, %v1753
    %v2040 = vpack.c.b16 %v1758, %v1756
    %v2041 = vpack.c.b16 %v1759, %v1757
    %v2042 = vpack.c.b16 %v1762, %v1760
    %v2043 = vpack.c.b16 %v1763, %v1761
    %v2044 = vpack.c.b16 %v1766, %v1764
    %v2045 = vpack.c.b16 %v1767, %v1765
    %v2046 = vpack.c.b16 %v1770, %v1768
    %v2047 = vpack.c.b16 %v1771, %v1769
    %v2048 = vpack.c.b16 %v1774, %v1772
    %v2049 = vpack.c.b16 %v1775, %v1773
    %v2050 = vpack.c.b16 %v1778, %v1776
    %v2051 = vpack.c.b16 %v1779, %v1777
    %v2052 = vpack.c.b16 %v1782, %v1780
    %v2053 = vpack.c.b16 %v1783, %v1781
    %v2054 = vpack.c.b16 %v1786, %v1784
    %v2055 = vpack.c.b16 %v1787, %v1785
    %v2056 = vpack.c.b16 %v1790, %v1788
    %v2057 = vpack.c.b16 %v1791, %v1789
    %v2058 = vpack.c.b16 %v1794, %v1792
    %v2059 = vpack.c.b16 %v1795, %v1793
    %v2060 = vpack.c.b16 %v1798, %v1796
    %v2061 = vpack.c.b16 %v1799, %v1797
    %v2062 = vpack.c.b16 %v1802, %v1800
    %v2063 = vpack.c.b16 %v1803, %v1801
    %v2064 = vpack.c.b16 %v1806, %v1804
    %v2065 = vpack.c.b16 %v1807, %v1805
    %v2066 = vpack.c.b16 %v1810, %v1808
    %v2067 = vpack.c.b16 %v1811, %v1809
    %2324 = vmatprep.subr.bf16.mxu0 %v1813
    %2325 = vmatpush1.bf16.msra.mxu0 %v1812
    %2326 = vmatprep.subr.bf16.mxu0 %v1815
    %2327 = vmatpush1.bf16.msra.mxu0 %v1814
    %2328 = vmatprep.subr.bf16.mxu0 %v1817
    %2329 = vmatpush1.bf16.msra.mxu0 %v1816
    %2330 = vmatprep.subr.bf16.mxu0 %v1819
    %2331 = vmatpush1.bf16.msra.mxu0 %v1818
    %2332 = vmatprep.subr.bf16.mxu0 %v1821
    %2333 = vmatpush1.bf16.msra.mxu0 %v1820
    %2334 = vmatprep.subr.bf16.mxu0 %v1823
    %2335 = vmatpush1.bf16.msra.mxu0 %v1822
    %2336 = vmatprep.subr.bf16.mxu0 %v1825
    %2337 = vmatpush1.bf16.msra.mxu0 %v1824
    %2338 = vmatprep.subr.bf16.mxu0 %v1827
    %2339 = vmatpush1.bf16.msra.mxu0 %v1826
    %2340 = vmatprep.subr.bf16.mxu0 %v1829
    %2341 = vmatpush1.bf16.msra.mxu0 %v1828
    %2342 = vmatprep.subr.bf16.mxu0 %v1831
    %2343 = vmatpush1.bf16.msra.mxu0 %v1830
    %2344 = vmatprep.subr.bf16.mxu0 %v1833
    %2345 = vmatpush1.bf16.msra.mxu0 %v1832
    %2346 = vmatprep.subr.bf16.mxu0 %v1835
    %2347 = vmatpush1.bf16.msra.mxu0 %v1834
    %2348 = vmatprep.subr.bf16.mxu0 %v1837
    %2349 = vmatpush1.bf16.msra.mxu0 %v1836
    %2350 = vmatprep.subr.bf16.mxu0 %v1839
    %2351 = vmatpush1.bf16.msra.mxu0 %v1838
    %2352 = vmatprep.subr.bf16.mxu0 %v1841
    %2353 = vmatpush1.bf16.msra.mxu0 %v1840
    %2354 = vmatprep.subr.bf16.mxu0 %v1843
    %2355 = vmatpush1.bf16.msra.mxu0 %v1842
    %2356 = vmatprep.mubr.bf16.mxu0 %v1013
    %2357 = vmatmul.mubr.bf16.gmra.mrb[0].mxu0 %v1012
    %v2358 = vpop.f32.mrb[0].mxu0
    %v2359 = vadd.f32 %v925, %v2358
    %v2360 = vpop.f32.mrb[0].mxu0
    %v2361 = vadd.f32 %v929, %v2360
    %v2362 = vpop.f32.mrb[0].mxu0
    %v2363 = vpop.f32.mrb[0].mxu0
    %2364 = vdwg.mxu0
    %2365 = vmatprep.subr.bf16.mxu0 %v1845
    %2366 = vmatpush1.bf16.msra.mxu0 %v1844
    %2367 = vmatprep.subr.bf16.mxu0 %v1847
    %2368 = vmatpush1.bf16.msra.mxu0 %v1846
    %2369 = vmatprep.subr.bf16.mxu0 %v1849
    %2370 = vmatpush1.bf16.msra.mxu0 %v1848
    %2371 = vmatprep.subr.bf16.mxu0 %v1851
    %2372 = vmatpush1.bf16.msra.mxu0 %v1850
    %2373 = vmatprep.subr.bf16.mxu0 %v1853
    %2374 = vmatpush1.bf16.msra.mxu0 %v1852
    %2375 = vmatprep.subr.bf16.mxu0 %v1855
    %2376 = vmatpush1.bf16.msra.mxu0 %v1854
    %2377 = vmatprep.subr.bf16.mxu0 %v1857
    %2378 = vmatpush1.bf16.msra.mxu0 %v1856
    %2379 = vmatprep.subr.bf16.mxu0 %v1859
    %2380 = vmatpush1.bf16.msra.mxu0 %v1858
    %2381 = vmatprep.subr.bf16.mxu0 %v1861
    %2382 = vmatpush1.bf16.msra.mxu0 %v1860
    %2383 = vmatprep.subr.bf16.mxu0 %v1863
    %2384 = vmatpush1.bf16.msra.mxu0 %v1862
    %2385 = vmatprep.subr.bf16.mxu0 %v1865
    %2386 = vmatpush1.bf16.msra.mxu0 %v1864
    %2387 = vmatprep.subr.bf16.mxu0 %v1867
    %2388 = vmatpush1.bf16.msra.mxu0 %v1866
    %2389 = vmatprep.subr.bf16.mxu0 %v1869
    %2390 = vmatpush1.bf16.msra.mxu0 %v1868
    %2391 = vmatprep.subr.bf16.mxu0 %v1871
    %2392 = vmatpush1.bf16.msra.mxu0 %v1870
    %2393 = vmatprep.subr.bf16.mxu0 %v1873
    %2394 = vmatpush1.bf16.msra.mxu0 %v1872
    %2395 = vmatprep.subr.bf16.mxu0 %v1875
    %2396 = vmatpush1.bf16.msra.mxu0 %v1874
    %2397 = vmatprep.mubr.bf16.mxu0 %v1015
    %2398 = vmatmul.mubr.bf16.gmra.mrb[0].mxu0 %v1014
    %v2399 = vpop.f32.mrb[0].mxu0
    %v2400 = vadd.f32 %v2359, %v2399
    %v2401 = vpop.f32.mrb[0].mxu0
    %v2402 = vadd.f32 %v2361, %v2401
    %v2403 = vpop.f32.mrb[0].mxu0
    %v2404 = vpop.f32.mrb[0].mxu0
    %2405 = vdwg.mxu0
    %2406 = vmatprep.subr.bf16.mxu0 %v1877
    %2407 = vmatpush1.bf16.msra.mxu0 %v1876
    %2408 = vmatprep.subr.bf16.mxu0 %v1879
    %2409 = vmatpush1.bf16.msra.mxu0 %v1878
    %2410 = vmatprep.subr.bf16.mxu0 %v1881
    %2411 = vmatpush1.bf16.msra.mxu0 %v1880
    %2412 = vmatprep.subr.bf16.mxu0 %v1883
    %2413 = vmatpush1.bf16.msra.mxu0 %v1882
    %2414 = vmatprep.subr.bf16.mxu0 %v1885
    %2415 = vmatpush1.bf16.msra.mxu0 %v1884
    %2416 = vmatprep.subr.bf16.mxu0 %v1887
    %2417 = vmatpush1.bf16.msra.mxu0 %v1886
    %2418 = vmatprep.subr.bf16.mxu0 %v1889
    %2419 = vmatpush1.bf16.msra.mxu0 %v1888
    %2420 = vmatprep.subr.bf16.mxu0 %v1891
    %2421 = vmatpush1.bf16.msra.mxu0 %v1890
    %2422 = vmatprep.subr.bf16.mxu0 %v1893
    %2423 = vmatpush1.bf16.msra.mxu0 %v1892
    %2424 = vmatprep.subr.bf16.mxu0 %v1895
    %2425 = vmatpush1.bf16.msra.mxu0 %v1894
    %2426 = vmatprep.subr.bf16.mxu0 %v1897
    %2427 = vmatpush1.bf16.msra.mxu0 %v1896
    %2428 = vmatprep.subr.bf16.mxu0 %v1899
    %2429 = vmatpush1.bf16.msra.mxu0 %v1898
    %2430 = vmatprep.subr.bf16.mxu0 %v1901
    %2431 = vmatpush1.bf16.msra.mxu0 %v1900
    %2432 = vmatprep.subr.bf16.mxu0 %v1903
    %2433 = vmatpush1.bf16.msra.mxu0 %v1902
    %2434 = vmatprep.subr.bf16.mxu0 %v1905
    %2435 = vmatpush1.bf16.msra.mxu0 %v1904
    %2436 = vmatprep.subr.bf16.mxu0 %v1907
    %2437 = vmatpush1.bf16.msra.mxu0 %v1906
    %2438 = vmatprep.mubr.bf16.mxu0 %v1017
    %2439 = vmatmul.mubr.bf16.gmra.mrb[0].mxu0 %v1016
    %v2440 = vpop.f32.mrb[0].mxu0
    %v2441 = vadd.f32 %v2400, %v2440
    %v2442 = vpop.f32.mrb[0].mxu0
    %v2443 = vadd.f32 %v2402, %v2442
    %v2444 = vpop.f32.mrb[0].mxu0
    %v2445 = vpop.f32.mrb[0].mxu0
    %2446 = vdwg.mxu0
    %2447 = vmatprep.subr.bf16.mxu0 %v1909
    %2448 = vmatpush1.bf16.msra.mxu0 %v1908
    %2449 = vmatprep.subr.bf16.mxu0 %v1911
    %2450 = vmatpush1.bf16.msra.mxu0 %v1910
    %2451 = vmatprep.subr.bf16.mxu0 %v1913
    %2452 = vmatpush1.bf16.msra.mxu0 %v1912
    %2453 = vmatprep.subr.bf16.mxu0 %v1915
    %2454 = vmatpush1.bf16.msra.mxu0 %v1914
    %2455 = vmatprep.subr.bf16.mxu0 %v1917
    %2456 = vmatpush1.bf16.msra.mxu0 %v1916
    %2457 = vmatprep.subr.bf16.mxu0 %v1919
    %2458 = vmatpush1.bf16.msra.mxu0 %v1918
    %2459 = vmatprep.subr.bf16.mxu0 %v1921
    %2460 = vmatpush1.bf16.msra.mxu0 %v1920
    %2461 = vmatprep.subr.bf16.mxu0 %v1923
    %2462 = vmatpush1.bf16.msra.mxu0 %v1922
    %2463 = vmatprep.subr.bf16.mxu0 %v1925
    %2464 = vmatpush1.bf16.msra.mxu0 %v1924
    %2465 = vmatprep.subr.bf16.mxu0 %v1927
    %2466 = vmatpush1.bf16.msra.mxu0 %v1926
    %2467 = vmatprep.subr.bf16.mxu0 %v1929
    %2468 = vmatpush1.bf16.msra.mxu0 %v1928
    %2469 = vmatprep.subr.bf16.mxu0 %v1931
    %2470 = vmatpush1.bf16.msra.mxu0 %v1930
    %2471 = vmatprep.subr.bf16.mxu0 %v1933
    %2472 = vmatpush1.bf16.msra.mxu0 %v1932
    %2473 = vmatprep.subr.bf16.mxu0 %v1935
    %2474 = vmatpush1.bf16.msra.mxu0 %v1934
    %2475 = vmatprep.subr.bf16.mxu0 %v1937
    %2476 = vmatpush1.bf16.msra.mxu0 %v1936
    %2477 = vmatprep.subr.bf16.mxu0 %v1939
    %2478 = vmatpush1.bf16.msra.mxu0 %v1938
    %2479 = vmatprep.mubr.bf16.mxu0 %v1019
    %2480 = vmatmul.mubr.bf16.gmra.mrb[0].mxu0 %v1018
    %v2481 = vpop.f32.mrb[0].mxu0
    %v2482 = vadd.f32 %v2441, %v2481
    %v2483 = vpop.f32.mrb[0].mxu0
    %v2484 = vadd.f32 %v2443, %v2483
    %v2485 = vpop.f32.mrb[0].mxu0
    %v2486 = vpop.f32.mrb[0].mxu0
    %2487 = vdwg.mxu0
    %2488 = vmatprep.subr.bf16.mxu0 %v1941
    %2489 = vmatpush1.bf16.msra.mxu0 %v1940
    %2490 = vmatprep.subr.bf16.mxu0 %v1943
    %2491 = vmatpush1.bf16.msra.mxu0 %v1942
    %2492 = vmatprep.subr.bf16.mxu0 %v1945
    %2493 = vmatpush1.bf16.msra.mxu0 %v1944
    %2494 = vmatprep.subr.bf16.mxu0 %v1947
    %2495 = vmatpush1.bf16.msra.mxu0 %v1946
    %2496 = vmatprep.subr.bf16.mxu0 %v1949
    %2497 = vmatpush1.bf16.msra.mxu0 %v1948
    %2498 = vmatprep.subr.bf16.mxu0 %v1951
    %2499 = vmatpush1.bf16.msra.mxu0 %v1950
    %2500 = vmatprep.subr.bf16.mxu0 %v1953
    %2501 = vmatpush1.bf16.msra.mxu0 %v1952
    %2502 = vmatprep.subr.bf16.mxu0 %v1955
    %2503 = vmatpush1.bf16.msra.mxu0 %v1954
    %2504 = vmatprep.subr.bf16.mxu0 %v1957
    %2505 = vmatpush1.bf16.msra.mxu0 %v1956
    %2506 = vmatprep.subr.bf16.mxu0 %v1959
    %2507 = vmatpush1.bf16.msra.mxu0 %v1958
    %2508 = vmatprep.subr.bf16.mxu0 %v1961
    %2509 = vmatpush1.bf16.msra.mxu0 %v1960
    %2510 = vmatprep.subr.bf16.mxu0 %v1963
    %2511 = vmatpush1.bf16.msra.mxu0 %v1962
    %2512 = vmatprep.subr.bf16.mxu0 %v1965
    %2513 = vmatpush1.bf16.msra.mxu0 %v1964
    %2514 = vmatprep.subr.bf16.mxu0 %v1967
    %2515 = vmatpush1.bf16.msra.mxu0 %v1966
    %2516 = vmatprep.subr.bf16.mxu0 %v1969
    %2517 = vmatpush1.bf16.msra.mxu0 %v1968
    %2518 = vmatprep.subr.bf16.mxu0 %v1971
    %2519 = vmatpush1.bf16.msra.mxu0 %v1970
    %2520 = vmatprep.mubr.bf16.mxu0 %v1021
    %2521 = vmatmul.mubr.bf16.gmra.mrb[0].mxu0 %v1020
    %v2522 = vpop.f32.mrb[0].mxu0
    %v2523 = vadd.f32 %v2482, %v2522
    %v2524 = vpop.f32.mrb[0].mxu0
    %v2525 = vadd.f32 %v2484, %v2524
    %v2526 = vpop.f32.mrb[0].mxu0
    %v2527 = vpop.f32.mrb[0].mxu0
    %2528 = vdwg.mxu0
    %2529 = vmatprep.subr.bf16.mxu0 %v1973
    %2530 = vmatpush1.bf16.msra.mxu0 %v1972
    %2531 = vmatprep.subr.bf16.mxu0 %v1975
    %2532 = vmatpush1.bf16.msra.mxu0 %v1974
    %2533 = vmatprep.subr.bf16.mxu0 %v1977
    %2534 = vmatpush1.bf16.msra.mxu0 %v1976
    %2535 = vmatprep.subr.bf16.mxu0 %v1979
    %2536 = vmatpush1.bf16.msra.mxu0 %v1978
    %2537 = vmatprep.subr.bf16.mxu0 %v1981
    %2538 = vmatpush1.bf16.msra.mxu0 %v1980
    %2539 = vmatprep.subr.bf16.mxu0 %v1983
    %2540 = vmatpush1.bf16.msra.mxu0 %v1982
    %2541 = vmatprep.subr.bf16.mxu0 %v1985
    %2542 = vmatpush1.bf16.msra.mxu0 %v1984
    %2543 = vmatprep.subr.bf16.mxu0 %v1987
    %2544 = vmatpush1.bf16.msra.mxu0 %v1986
    %2545 = vmatprep.subr.bf16.mxu0 %v1989
    %2546 = vmatpush1.bf16.msra.mxu0 %v1988
    %2547 = vmatprep.subr.bf16.mxu0 %v1991
    %2548 = vmatpush1.bf16.msra.mxu0 %v1990
    %2549 = vmatprep.subr.bf16.mxu0 %v1993
    %2550 = vmatpush1.bf16.msra.mxu0 %v1992
    %2551 = vmatprep.subr.bf16.mxu0 %v1995
    %2552 = vmatpush1.bf16.msra.mxu0 %v1994
    %2553 = vmatprep.subr.bf16.mxu0 %v1997
    %2554 = vmatpush1.bf16.msra.mxu0 %v1996
    %2555 = vmatprep.subr.bf16.mxu0 %v1999
    %2556 = vmatpush1.bf16.msra.mxu0 %v1998
    %2557 = vmatprep.subr.bf16.mxu0 %v2001
    %2558 = vmatpush1.bf16.msra.mxu0 %v2000
    %2559 = vmatprep.subr.bf16.mxu0 %v2003
    %2560 = vmatpush1.bf16.msra.mxu0 %v2002
    %2561 = vmatprep.mubr.bf16.mxu0 %v1023
    %2562 = vmatmul.mubr.bf16.gmra.mrb[0].mxu0 %v1022
    %v2563 = vpop.f32.mrb[0].mxu0
    %v2564 = vadd.f32 %v2523, %v2563
    %v2565 = vpop.f32.mrb[0].mxu0
    %v2566 = vadd.f32 %v2525, %v2565
    %v2567 = vpop.f32.mrb[0].mxu0
    %v2568 = vpop.f32.mrb[0].mxu0
    %2569 = vdwg.mxu0
    %2570 = vmatprep.subr.bf16.mxu0 %v2005
    %2571 = vmatpush1.bf16.msra.mxu0 %v2004
    %2572 = vmatprep.subr.bf16.mxu0 %v2007
    %2573 = vmatpush1.bf16.msra.mxu0 %v2006
    %2574 = vmatprep.subr.bf16.mxu0 %v2009
    %2575 = vmatpush1.bf16.msra.mxu0 %v2008
    %2576 = vmatprep.subr.bf16.mxu0 %v2011
    %2577 = vmatpush1.bf16.msra.mxu0 %v2010
    %2578 = vmatprep.subr.bf16.mxu0 %v2013
    %2579 = vmatpush1.bf16.msra.mxu0 %v2012
    %2580 = vmatprep.subr.bf16.mxu0 %v2015
    %2581 = vmatpush1.bf16.msra.mxu0 %v2014
    %2582 = vmatprep.subr.bf16.mxu0 %v2017
    %2583 = vmatpush1.bf16.msra.mxu0 %v2016
    %2584 = vmatprep.subr.bf16.mxu0 %v2019
    %2585 = vmatpush1.bf16.msra.mxu0 %v2018
    %2586 = vmatprep.subr.bf16.mxu0 %v2021
    %2587 = vmatpush1.bf16.msra.mxu0 %v2020
    %2588 = vmatprep.subr.bf16.mxu0 %v2023
    %2589 = vmatpush1.bf16.msra.mxu0 %v2022
    %2590 = vmatprep.subr.bf16.mxu0 %v2025
    %2591 = vmatpush1.bf16.msra.mxu0 %v2024
    %2592 = vmatprep.subr.bf16.mxu0 %v2027
    %2593 = vmatpush1.bf16.msra.mxu0 %v2026
    %2594 = vmatprep.subr.bf16.mxu0 %v2029
    %2595 = vmatpush1.bf16.msra.mxu0 %v2028
    %2596 = vmatprep.subr.bf16.mxu0 %v2031
    %2597 = vmatpush1.bf16.msra.mxu0 %v2030
    %2598 = vmatprep.subr.bf16.mxu0 %v2033
    %2599 = vmatpush1.bf16.msra.mxu0 %v2032
    %2600 = vmatprep.subr.bf16.mxu0 %v2035
    %2601 = vmatpush1.bf16.msra.mxu0 %v2034
    %2602 = vmatprep.mubr.bf16.mxu0 %v1025
    %2603 = vmatmul.mubr.bf16.gmra.mrb[0].mxu0 %v1024
    %v2604 = vpop.f32.mrb[0].mxu0
    %v2605 = vadd.f32 %v2564, %v2604
    %v2606 = vpop.f32.mrb[0].mxu0
    %v2607 = vadd.f32 %v2566, %v2606
    %v2608 = vpop.f32.mrb[0].mxu0
    %v2609 = vpop.f32.mrb[0].mxu0
    %2610 = vdwg.mxu0
    %2611 = vmatprep.subr.bf16.mxu0 %v2037
    %2612 = vmatpush1.bf16.msra.mxu0 %v2036
    %2613 = vmatprep.subr.bf16.mxu0 %v2039
    %2614 = vmatpush1.bf16.msra.mxu0 %v2038
    %2615 = vmatprep.subr.bf16.mxu0 %v2041
    %2616 = vmatpush1.bf16.msra.mxu0 %v2040
    %2617 = vmatprep.subr.bf16.mxu0 %v2043
    %2618 = vmatpush1.bf16.msra.mxu0 %v2042
    %2619 = vmatprep.subr.bf16.mxu0 %v2045
    %2620 = vmatpush1.bf16.msra.mxu0 %v2044
    %2621 = vmatprep.subr.bf16.mxu0 %v2047
    %2622 = vmatpush1.bf16.msra.mxu0 %v2046
    %2623 = vmatprep.subr.bf16.mxu0 %v2049
    %2624 = vmatpush1.bf16.msra.mxu0 %v2048
    %2625 = vmatprep.subr.bf16.mxu0 %v2051
    %2626 = vmatpush1.bf16.msra.mxu0 %v2050
    %2627 = vmatprep.subr.bf16.mxu0 %v2053
    %2628 = vmatpush1.bf16.msra.mxu0 %v2052
    %2629 = vmatprep.subr.bf16.mxu0 %v2055
    %2630 = vmatpush1.bf16.msra.mxu0 %v2054
    %2631 = vmatprep.subr.bf16.mxu0 %v2057
    %2632 = vmatpush1.bf16.msra.mxu0 %v2056
    %2633 = vmatprep.subr.bf16.mxu0 %v2059
    %2634 = vmatpush1.bf16.msra.mxu0 %v2058
    %2635 = vmatprep.subr.bf16.mxu0 %v2061
    %2636 = vmatpush1.bf16.msra.mxu0 %v2060
    %2637 = vmatprep.subr.bf16.mxu0 %v2063
    %2638 = vmatpush1.bf16.msra.mxu0 %v2062
    %2639 = vmatprep.subr.bf16.mxu0 %v2065
    %2640 = vmatpush1.bf16.msra.mxu0 %v2064
    %2641 = vmatprep.subr.bf16.mxu0 %v2067
    %2642 = vmatpush1.bf16.msra.mxu0 %v2066
    %2643 = vmatprep.mubr.bf16.mxu0 %v1027
    %2644 = vmatmul.mubr.bf16.gmra.mrb[0].mxu0 %v1026
    %v2645 = vpop.f32.mrb[0].mxu0
    %v2646 = vadd.f32 %v2605, %v2645
    %v2647 = vpop.f32.mrb[0].mxu0
    %v2648 = vadd.f32 %v2607, %v2647
    %v2649 = vpop.f32.mrb[0].mxu0
    %v2650 = vpop.f32.mrb[0].mxu0
    %2651 = vdwg.mxu0
    %v2654 = vcombine.low %v2646, %v2648
    %v2656 = vunpack.c.l.s4 1983009808
    %v2657 = vunpack.c.0.s8 %v2656
    %v2658 = vlaneseq
    %v2659 = vshrl.u32 %v2658, 7
    %v2660 = vsub.s32 %v2657, %v2659
    %v2661 = vrot.slane %v2654, %v2660
    %2663 = vst [vmem:[#allocation9] sm:$0xf] %v2661
    %v2664 = vpack.c.bf16 %v2646, %v2646
    %v2665 = vpack.c.bf16 %v2648, %v2648
    %v2666 = vld [vmem:[#allocation7] sm:$0xf]
    %v2667 = vld [vmem:[#allocation7 + $0x4] sm:$0xf]
    %v2668 = vld [vmem:[#allocation7 + $0x8] sm:$0xf]
    %v2669 = vld [vmem:[#allocation7 + $0xc] sm:$0xf]
    %v2670 = vld [vmem:[#allocation7 + $0x10] sm:$0xf]
    %v2671 = vld [vmem:[#allocation7 + $0x14] sm:$0xf]
    %v2672 = vld [vmem:[#allocation7 + $0x18] sm:$0xf]
    %v2673 = vld [vmem:[#allocation7 + $0x1c] sm:$0xf]
    %v2674 = vld [vmem:[#allocation7 + $0x20] sm:$0xf]
    %v2675 = vld [vmem:[#allocation7 + $0x24] sm:$0xf]
    %v2676 = vld [vmem:[#allocation7 + $0x28] sm:$0xf]
    %v2677 = vld [vmem:[#allocation7 + $0x2c] sm:$0xf]
    %v2678 = vld [vmem:[#allocation7 + $0x30] sm:$0xf]
    %v2679 = vld [vmem:[#allocation7 + $0x34] sm:$0xf]
    %v2680 = vld [vmem:[#allocation7 + $0x38] sm:$0xf]
    %v2681 = vld [vmem:[#allocation7 + $0x3c] sm:$0xf]
    %v2682 = vld [vmem:[#allocation7 + $0x40] sm:$0xf]
    %v2683 = vld [vmem:[#allocation7 + $0x44] sm:$0xf]
    %v2684 = vld [vmem:[#allocation7 + $0x48] sm:$0xf]
    %v2685 = vld [vmem:[#allocation7 + $0x4c] sm:$0xf]
    %v2686 = vld [vmem:[#allocation7 + $0x50] sm:$0xf]
    %v2687 = vld [vmem:[#allocation7 + $0x54] sm:$0xf]
    %v2688 = vld [vmem:[#allocation7 + $0x58] sm:$0xf]
    %v2689 = vld [vmem:[#allocation7 + $0x5c] sm:$0xf]
    %v2690 = vld [vmem:[#allocation7 + $0x60] sm:$0xf]
    %v2691 = vld [vmem:[#allocation7 + $0x64] sm:$0xf]
    %v2692 = vld [vmem:[#allocation7 + $0x68] sm:$0xf]
    %v2693 = vld [vmem:[#allocation7 + $0x6c] sm:$0xf]
    %v2694 = vld [vmem:[#allocation7 + $0x70] sm:$0xf]
    %v2695 = vld [vmem:[#allocation7 + $0x74] sm:$0xf]
    %v2696 = vld [vmem:[#allocation7 + $0x78] sm:$0xf]
    %v2697 = vld [vmem:[#allocation7 + $0x7c] sm:$0xf]
    %v2698 = vld [vmem:[%s4] sm:$0x1]
    %v2700 = vlaneseq
    %v2701 = vshrl.u32 %v2700, 7
    %v2702 = vsub.s32 0, %v2701
    %v2703 = vrot.slane %v2698, %v2702
    %v2737 = vunpack.c.l.b16 %v2666
    %v2738 = vunpack.c.l.b16 %v2667
    %v2739 = vunpack.c.l.b16 %v2668
    %v2740 = vunpack.c.l.b16 %v2669
    %v2741 = vunpack.c.l.b16 %v2670
    %v2742 = vunpack.c.l.b16 %v2671
    %v2743 = vunpack.c.l.b16 %v2672
    %v2744 = vunpack.c.l.b16 %v2673
    %v2745 = vunpack.c.l.b16 %v2674
    %v2746 = vunpack.c.l.b16 %v2675
    %v2747 = vunpack.c.l.b16 %v2676
    %v2748 = vunpack.c.l.b16 %v2677
    %v2749 = vunpack.c.l.b16 %v2678
    %v2750 = vunpack.c.l.b16 %v2679
    %v2751 = vunpack.c.l.b16 %v2680
    %v2752 = vunpack.c.l.b16 %v2681
    %v2753 = vunpack.c.l.b16 %v2682
    %v2754 = vunpack.c.l.b16 %v2683
    %v2755 = vunpack.c.l.b16 %v2684
    %v2756 = vunpack.c.l.b16 %v2685
    %v2757 = vunpack.c.l.b16 %v2686
    %v2758 = vunpack.c.l.b16 %v2687
    %v2759 = vunpack.c.l.b16 %v2688
    %v2760 = vunpack.c.l.b16 %v2689
    %v2761 = vunpack.c.l.b16 %v2690
    %v2762 = vunpack.c.l.b16 %v2691
    %v2763 = vunpack.c.l.b16 %v2692
    %v2764 = vunpack.c.l.b16 %v2693
    %v2765 = vunpack.c.l.b16 %v2694
    %v2766 = vunpack.c.l.b16 %v2695
    %v2767 = vunpack.c.l.b16 %v2696
    %v2768 = vunpack.c.l.b16 %v2697
    %v2769 = vpack.c.b16 %v2738, %v2737
    %v2770 = vpack.c.b16 %v2740, %v2739
    %v2771 = vpack.c.b16 %v2742, %v2741
    %v2772 = vpack.c.b16 %v2744, %v2743
    %v2773 = vpack.c.b16 %v2746, %v2745
    %v2774 = vpack.c.b16 %v2748, %v2747
    %v2775 = vpack.c.b16 %v2750, %v2749
    %v2776 = vpack.c.b16 %v2752, %v2751
    %v2777 = vpack.c.b16 %v2754, %v2753
    %v2778 = vpack.c.b16 %v2756, %v2755
    %v2779 = vpack.c.b16 %v2758, %v2757
    %v2780 = vpack.c.b16 %v2760, %v2759
    %v2781 = vpack.c.b16 %v2762, %v2761
    %v2782 = vpack.c.b16 %v2764, %v2763
    %v2783 = vpack.c.b16 %v2766, %v2765
    %v2784 = vpack.c.b16 %v2768, %v2767
    %2801 = vmatprep.subr.bf16.mxu0 0
    %2802 = vmatpush1.bf16.msra.mxu0 %v2769
    %2803 = vmatprep.subr.bf16.mxu0 0
    %2804 = vmatpush1.bf16.msra.mxu0 %v2770
    %2805 = vmatprep.subr.bf16.mxu0 0
    %2806 = vmatpush1.bf16.msra.mxu0 %v2771
    %2807 = vmatprep.subr.bf16.mxu0 0
    %2808 = vmatpush1.bf16.msra.mxu0 %v2772
    %2809 = vmatprep.subr.bf16.mxu0 0
    %2810 = vmatpush1.bf16.msra.mxu0 %v2773
    %2811 = vmatprep.subr.bf16.mxu0 0
    %2812 = vmatpush1.bf16.msra.mxu0 %v2774
    %2813 = vmatprep.subr.bf16.mxu0 0
    %2814 = vmatpush1.bf16.msra.mxu0 %v2775
    %2815 = vmatprep.subr.bf16.mxu0 0
    %2816 = vmatpush1.bf16.msra.mxu0 %v2776
    %2817 = vmatprep.subr.bf16.mxu0 0
    %2818 = vmatpush1.bf16.msra.mxu0 %v2777
    %2819 = vmatprep.subr.bf16.mxu0 0
    %2820 = vmatpush1.bf16.msra.mxu0 %v2778
    %2821 = vmatprep.subr.bf16.mxu0 0
    %2822 = vmatpush1.bf16.msra.mxu0 %v2779
    %2823 = vmatprep.subr.bf16.mxu0 0
    %2824 = vmatpush1.bf16.msra.mxu0 %v2780
    %2825 = vmatprep.subr.bf16.mxu0 0
    %2826 = vmatpush1.bf16.msra.mxu0 %v2781
    %2827 = vmatprep.subr.bf16.mxu0 0
    %2828 = vmatpush1.bf16.msra.mxu0 %v2782
    %2829 = vmatprep.subr.bf16.mxu0 0
    %2830 = vmatpush1.bf16.msra.mxu0 %v2783
    %2831 = vmatprep.subr.bf16.mxu0 0
    %2832 = vmatpush1.bf16.msra.mxu0 %v2784
    %2833 = vmatprep.mubr.bf16.mxu0 %v2665
    %2834 = vmatmul.mubr.bf16.gmra.mrb[0].mxu0 %v2664
    %v2835 = vpop.f32.mrb[0].mxu0
    %v2836 = vadd.f32 %v2703, %v2835
    %v2837 = vpop.f32.mrb[0].mxu0
    %v2838 = vpop.f32.mrb[0].mxu0
    %v2839 = vpop.f32.mrb[0].mxu0
    %2840 = vdwg.mxu0
    %2841 = vst [vmem:[#allocation11] sm:$0x3] %v2836
    %vm2842 = vcmask 1041408
    %v2843 = vsel %vm2842, %v2836, -inf
    %2844 = vmax.xlane.f32.xlu0 %v2843
    %v2845 = vpop.xlane.xlu0 %2844
    %v2846 = vsub.f32 %v2836, %v2845
    %v2847 = vmul.f32 %v2846, 1.442695
    %v2848 = vpow.pop %v2847
    %v2849 = vsel %vm2842, %v2848, 0.0
    %2850 = vadd.xlane.f32.xlu0 %v2849
    %v2851 = vpop.xlane.xlu0 %2850
    %v2852 = vrcp.pop %v2851
    %v2853 = vmul.f32 %v2848, %v2852
    %2854 = vst [vmem:[#allocation12] sm:$0x3] %v2853
    // Predicated region
    $region34: #{tpu_custom_call.1} parent=1 // pred_check
      _
    $region35: #{tpu_custom_call.1} parent=1 // pred_check_branch
      %2856 = sbr.rel (0) target = $region37
    $region36: #{tpu_custom_call.1} parent=1 // pred_region
      %s2858 = ssub.s32 512, 512
      %2859 = vsyncadd [#allocation4], %s2858
      %s2861 = sshll.u32 [#allocation8], 4
      %s2862 = int_to_ptr.vmem [resolvable:$true] %s2861
      %2864 = dma.vmem_to_hbm [thread:$0]  %s2862, 512, %s5, [#allocation4]
    $region37: #{tpu_custom_call.1} parent=1 // pred_fallthru
      _
    // Predicated region
    $region38: #{tpu_custom_call.1} parent=1 // pred_check
      _
    $region39: #{tpu_custom_call.1} parent=1 // pred_check_branch
      %2866 = sbr.rel (0) target = $region41
    $region40: #{tpu_custom_call.1} parent=1 // pred_region
      %s2868 = ssub.s32 64, 64
      %2869 = vsyncadd [#allocation10], %s2868
      %s2871 = sshll.u32 [#allocation9], 4
      %s2872 = int_to_ptr.vmem [resolvable:$true] %s2871
      %2874 = dma.vmem_to_hbm [thread:$0]  %s2872, 64, %s6, [#allocation10]
    $region41: #{tpu_custom_call.1} parent=1 // pred_fallthru
      _
    // Predicated region
    $region42: #{tpu_custom_call.1} parent=1 // pred_check
      _
    $region43: #{tpu_custom_call.1} parent=1 // pred_check_branch
      %2876 = sbr.rel (0) target = $region45
    $region44: #{tpu_custom_call.1} parent=1 // pred_region
      %s2878 = ssub.s32 32, 32
      %2879 = vsyncadd [#allocation10], %s2878
      %s2881 = sshll.u32 [#allocation11], 4
      %s2882 = int_to_ptr.vmem [resolvable:$true] %s2881
      %2884 = dma.vmem_to_hbm [thread:$0]  %s2882, 32, %s7, [#allocation10]
    $region45: #{tpu_custom_call.1} parent=1 // pred_fallthru
      _
    // Predicated region
    $region46: #{tpu_custom_call.1} parent=1 // pred_check
      _
    $region47: #{tpu_custom_call.1} parent=1 // pred_check_branch
      %2886 = sbr.rel (0) target = $region49
    $region48: #{tpu_custom_call.1} parent=1 // pred_region
      %s2888 = ssub.s32 32, 32
      %2889 = vsyncadd [#allocation13], %s2888
      %s2891 = sshll.u32 [#allocation12], 4
      %s2892 = int_to_ptr.vmem [resolvable:$true] %s2891
      %2894 = dma.vmem_to_hbm [thread:$0]  %s2892, 32, %s8, [#allocation13]
    $region49: #{tpu_custom_call.1} parent=1 // pred_fallthru
      _
    // Predicated region
    $region50: #{tpu_custom_call.1} parent=1 // pred_check
      _
    $region51: #{tpu_custom_call.1} parent=1 // pred_check_branch
      %2896 = sbr.rel (0) target = $region53
    $region52: #{tpu_custom_call.1} parent=1 // pred_region
      %2897 = dma.done [#allocation4], 512
    $region53: #{tpu_custom_call.1} parent=1 // pred_fallthru
      _
    // Predicated region
    $region54: #{tpu_custom_call.1} parent=1 // pred_check
      _
    $region55: #{tpu_custom_call.1} parent=1 // pred_check_branch
      %2899 = sbr.rel (0) target = $region57
    $region56: #{tpu_custom_call.1} parent=1 // pred_region
      %2900 = dma.done [#allocation10], 64
    $region57: #{tpu_custom_call.1} parent=1 // pred_fallthru
      _
    // Predicated region
    $region58: #{tpu_custom_call.1} parent=1 // pred_check
      _
    $region59: #{tpu_custom_call.1} parent=1 // pred_check_branch
      %2902 = sbr.rel (0) target = $region61
    $region60: #{tpu_custom_call.1} parent=1 // pred_region
      %2903 = dma.done [#allocation10], 32
    $region61: #{tpu_custom_call.1} parent=1 // pred_fallthru
      _
    // Predicated region
    $region62: #{tpu_custom_call.1} parent=1 // pred_check
      _
    $region63: #{tpu_custom_call.1} parent=1 // pred_check_branch
      %2905 = sbr.rel (0) target = $region65
    $region64: #{tpu_custom_call.1} parent=1 // pred_region
      %2906 = dma.done [#allocation13], 32
    $region65: #{tpu_custom_call.1} parent=1 // pred_fallthru
      _
    %2907 = vsyncpa [#allocation3], 1
    %2908 = vsyncpa [#allocation6], 1
    %2909 = vsyncpa [#allocation4], 1
    %2910 = vsyncpa [#allocation10], 1
    %2911 = vsyncpa [#allocation13], 1

</llo_original>
